<compile_context>
chip_gen: v7x
topology: tpu7x:2x2x1
jax: 0.10.0
libtpu: 0.0.40
codegen_flags: <defaults>
</compile_context>

<pallas_src>
import jax
import jax.numpy as jnp
from jax.experimental import pallas as pl
from jax.experimental.pallas import tpu as pltpu

DEPTH = 3
WIDTH = 128
D_IN = 64 * (12 + 13)   # 1600
LEAKY_SLOPE = 0.01      # PyTorch default negative_slope for leaky_relu
TB_MAX = 1024           # max batch-tile rows (VMEM-safe on v5e/v6e/v7x)


def _leaky_relu(x):
    return jnp.where(x >= 0, x, LEAKY_SLOPE * x)


def _round_up(v, m):
    return (v + m - 1) // m * m


def _is_v6e():
    try:
        return "v6" in jax.devices()[0].device_kind.lower()
    except Exception:
        return False


def chess_resnet_kernel(x_ref, w_in_ref, b_in_ref, w_mid_ref, b_mid_ref,
                        w_fin_ref, b_fin_ref, o_ref):
    # x tile arrives in its HBM dtype (f32 or bf16); cast to bf16 on the VPU
    # right before the fused MXU dot so the wrapper never materializes a
    # casted+padded copy of x in HBM.
    x = x_ref[...].astype(jnp.bfloat16)

    # One fused dot covers all three in_layers (weights concatenated to
    # (1600, 3*WIDTH)); f32 accumulation, bias + leaky_relu stay in f32.
    h_in_all = jnp.dot(x, w_in_ref[...], preferred_element_type=jnp.float32)
    h_in_all = _leaky_relu(h_in_all + b_in_ref[...])              # f32 (TB, 3*W)

    h = None
    for i in range(DEPTH):                                        # unrolled
        h_in = h_in_all[:, i * WIDTH:(i + 1) * WIDTH]             # f32 (TB, W)
        z = h_in if i == 0 else h + h_in                          # h == 0 at i=0
        acc = jnp.dot(z.astype(jnp.bfloat16), w_mid_ref[i],
                      preferred_element_type=jnp.float32)
        h = _leaky_relu(acc + b_mid_ref[i][None, :])              # f32 (TB, W)

    # final Linear(width -> 1): N=1 would waste the MXU; VPU multiply + lane
    # reduction (XLU) instead, bias scalar from SMEM.
    out = jnp.sum(h * w_fin_ref[...], axis=-1, keepdims=True) + b_fin_ref[0, 0]
    o_ref[...] = out.astype(o_ref.dtype)


@jax.jit
def chess_resnet_forward(x, params):
    """x: (B, 25, 8, 8), (25, 8, 8) or (B, 1600); returns (B, 1) float32."""
    if x.ndim == 3:
        x = x.reshape(1, -1, 8, 8)
    if x.ndim == 4:
        x = x.reshape(x.shape[0], -1)          # torch.flatten(x, 1) (no HBM pass)
    assert x.shape[-1] == D_IN
    B = x.shape[0]

    w_in, b_in, w_mid, b_mid, w_fin, b_fin = params

    # ---- parameter packing / casting (tiny, done outside the kernel) ----
    w_in_cat = jnp.transpose(w_in, (1, 0, 2)).reshape(D_IN, DEPTH * WIDTH)
    w_in_cat = w_in_cat.astype(jnp.bfloat16)                     # fused (1600, 384)
    b_in_cat = b_in.reshape(1, DEPTH * WIDTH).astype(jnp.float32)
    w_mid_bf = w_mid.astype(jnp.bfloat16)                        # (3, 128, 128)
    b_mid_f = b_mid.astype(jnp.float32)                          # (3, 128)
    w_fin_row = w_fin.reshape(1, WIDTH).astype(jnp.float32)
    b_fin_s = b_fin.reshape(1, 1).astype(jnp.float32)            # SMEM scalar

    # ---- batch tiling: balanced tiles, no padding, >=2 tiles for v7x ----
    num_tiles = pl.cdiv(B, TB_MAX)
    if num_tiles == 1 and B >= 256:
        num_tiles = 2            # keep both v7x TensorCores busy for moderate B
    TB = _round_up(pl.cdiv(B, num_tiles), 8)
    num_tiles = pl.cdiv(B, TB)   # re-derive after rounding
    grid = (num_tiles,)

    # v6e sits near the HBM roofline: triple-buffer the x tile there.
    use_deep_x_buffer = _is_v6e() and num_tiles >= 3
    x_index_map = lambda i: (i, 0)
    x_spec = pl.BlockSpec((TB, D_IN), x_index_map)
    if use_deep_x_buffer:
        try:
            x_spec = pl.BlockSpec((TB, D_IN), x_index_map,
                                  pipeline_mode=pl.Buffered(3))
        except TypeError:
            x_spec = pl.BlockSpec((TB, D_IN), x_index_map)

    # ---- VMEM budget (explicit limit; >16 MiB needed when TB > 512) ----
    itemsize_x = jnp.dtype(x.dtype).itemsize
    weight_bytes = ((D_IN * DEPTH * WIDTH + DEPTH * WIDTH * WIDTH) * 2   # bf16
                    + (DEPTH * WIDTH + DEPTH * WIDTH + WIDTH + 1) * 4)   # f32 bits
    n_x_bufs = 3 if use_deep_x_buffer else 2
    vmem_est = (n_x_bufs * TB * D_IN * itemsize_x        # x pipeline buffers
                + 2 * weight_bytes                       # double-buffered weights
                + TB * (DEPTH * WIDTH + 3 * WIDTH) * 4   # f32 intermediates
                + 2 * TB * 4)                            # out double buffer
    vmem_limit = int(min(48 << 20, max(vmem_est + (4 << 20), 16 << 20)))

    # ---- cost estimate so XLA can schedule around the custom call ----
    cost = pl.CostEstimate(
        flops=2 * B * (D_IN * DEPTH * WIDTH + DEPTH * WIDTH * WIDTH + WIDTH),
        transcendentals=0,
        bytes_accessed=B * D_IN * itemsize_x + weight_bytes + B * 4)

    out = pl.pallas_call(
        chess_resnet_kernel,
        out_shape=jax.ShapeDtypeStruct((B, 1), jnp.float32),
        grid=grid,
        in_specs=[
            x_spec,                                                    # x tile
            pl.BlockSpec((D_IN, DEPTH * WIDTH), lambda i: (0, 0)),     # fused w_in (resident)
            pl.BlockSpec((1, DEPTH * WIDTH), lambda i: (0, 0)),        # fused b_in
            pl.BlockSpec((DEPTH, WIDTH, WIDTH), lambda i: (0, 0, 0)),  # w_mid
            pl.BlockSpec((DEPTH, WIDTH), lambda i: (0, 0)),            # b_mid
            pl.BlockSpec((1, WIDTH), lambda i: (0, 0)),                # w_fin row
            pl.BlockSpec(memory_space=pltpu.MemorySpace.SMEM),         # b_fin scalar
        ],
        out_specs=pl.BlockSpec((TB, 1), lambda i: (i, 0)),
        compiler_params=pltpu.CompilerParams(
            dimension_semantics=("parallel",),
            vmem_limit_bytes=vmem_limit),
        cost_estimate=cost,
    )(x, w_in_cat, b_in_cat, w_mid_bf, b_mid_f, w_fin_row, b_fin_s)

    return out


def init_params(key):
    """Deterministic synthetic parameters (PyTorch-style uniform fan-in init).

    Weights are stored (in_features, out_features) so y = x @ W + b, which is
    numerically identical to PyTorch's x @ W.T with W stored (out, in).
    """
    ks = jax.random.split(key, 6)

    def unif(k, shape, fan_in):
        bound = 1.0 / jnp.sqrt(fan_in)
        return jax.random.uniform(k, shape, jnp.float32, -bound, bound)

    w_in = unif(ks[0], (DEPTH, D_IN, WIDTH), D_IN)
    b_in = unif(ks[1], (DEPTH, WIDTH), D_IN)
    w_mid = unif(ks[2], (DEPTH, WIDTH, WIDTH), WIDTH)
    b_mid = unif(ks[3], (DEPTH, WIDTH), WIDTH)
    w_fin = unif(ks[4], (WIDTH, 1), WIDTH)
    b_fin = unif(ks[5], (1, 1), WIDTH)
    return (w_in, b_in, w_mid, b_mid, w_fin, b_fin)


def _flatten(x):
    if x.ndim == 3:
        x = x.reshape(1, -1, 8, 8)
    if x.ndim == 4:
        x = x.reshape(x.shape[0], -1)
    return x


def reference_forward_f32(x, params):
    """Pure-JAX f32 reference mirroring the PyTorch module exactly."""
    x = _flatten(x)
    w_in, b_in, w_mid, b_mid, w_fin, b_fin = params
    h = 0.0
    for i in range(DEPTH):
        h_in = jax.nn.leaky_relu(x @ w_in[i] + b_in[i], LEAKY_SLOPE)
        h = jax.nn.leaky_relu((h + h_in) @ w_mid[i] + b_mid[i], LEAKY_SLOPE)
    return h @ w_fin + b_fin


def reference_forward_bf16(x, params):
    """Reference emulating the kernel's bf16-operand / f32-accumulate math."""
    x = _flatten(x).astype(jnp.bfloat16)
    w_in, b_in, w_mid, b_mid, w_fin, b_fin = params
    h = None
    for i in range(DEPTH):
        h_in = _leaky_relu(
            jnp.dot(x, w_in[i].astype(jnp.bfloat16),
                    preferred_element_type=jnp.float32) + b_in[i])
        z = h_in if h is None else h + h_in
        h = _leaky_relu(
            jnp.dot(z.astype(jnp.bfloat16), w_mid[i].astype(jnp.bfloat16),
                    preferred_element_type=jnp.float32) + b_mid[i])
    return jnp.sum(h * w_fin.reshape(1, WIDTH), axis=-1,
                   keepdims=True) + b_fin.reshape(1, 1)


if __name__ == "__main__":
    key = jax.random.PRNGKey(0)
    k_param, k_x1, k_x2 = jax.random.split(key, 3)

    params = init_params(k_param)

    # Small demo batch, module-implied layout (B, 25, 8, 8) -> (B, 1600).
    x_small = jax.random.normal(k_x1, (2, 12 + 13, 8, 8), dtype=jnp.float32)
    out_small = jax.block_until_ready(chess_resnet_forward(x_small, params))
    assert out_small.shape == (2, 1)
    ref_bf16 = reference_forward_bf16(x_small, params)
    assert jnp.allclose(out_small, ref_bf16, atol=5e-3, rtol=5e-3), (out_small, ref_bf16)
    ref_f32 = reference_forward_f32(x_small, params)
    assert jnp.allclose(out_small, ref_f32, atol=5e-2, rtol=5e-2), (out_small, ref_f32)

    # Larger ragged batch exercises the multi-tile grid (>=2 tiles for v7x)
    # and the masked tail-block path (no padding in the wrapper).
    x_big = jax.random.normal(k_x2, (300, 12 + 13, 8, 8), dtype=jnp.float32)
    out_big = jax.block_until_ready(chess_resnet_forward(x_big, params))
    assert out_big.shape == (300, 1)
    ref_big = reference_forward_bf16(x_big, params)
    assert jnp.allclose(out_big, ref_big, atol=5e-3, rtol=5e-3)

    print("KERNEL_OK")
</pallas_src>

<mosaic_0001>
module attributes {stable_mosaic.version = 11 : i64} {
  func.func @chess_resnet_kernel(%arg0: i32, %arg1: memref<8x1600xf32, #tpu.memory_space<vmem>>, %arg2: memref<1600x384xbf16, #tpu.memory_space<vmem>>, %arg3: memref<1x384xf32, #tpu.memory_space<vmem>>, %arg4: memref<3x128x128xbf16, #tpu.memory_space<vmem>>, %arg5: memref<3x128xf32, #tpu.memory_space<vmem>>, %arg6: memref<1x128xf32, #tpu.memory_space<vmem>>, %arg7: memref<1x1xf32, #tpu.memory_space<smem>>, %arg8: memref<8x1xf32, #tpu.memory_space<vmem>>) attributes {dimension_semantics = [#tpu.dimension_semantics<parallel>], iteration_bounds = array<i64: 1>, scalar_prefetch = 0 : i64, scratch_operands = 0 : i64, tpu.core_type = #tpu.core_type<tc>, window_params = [{transform_indices = @transform_0, window_bounds = array<i64: 8, 1600>}, {pipeline_mode = #tpu.pipeline_mode<synchronous>, transform_indices = @transform_1, window_bounds = array<i64: 1600, 384>}, {pipeline_mode = #tpu.pipeline_mode<synchronous>, transform_indices = @transform_2, window_bounds = array<i64: 1, 384>}, {pipeline_mode = #tpu.pipeline_mode<synchronous>, transform_indices = @transform_3, window_bounds = array<i64: 3, 128, 128>}, {pipeline_mode = #tpu.pipeline_mode<synchronous>, transform_indices = @transform_4, window_bounds = array<i64: 3, 128>}, {pipeline_mode = #tpu.pipeline_mode<synchronous>, transform_indices = @transform_5, window_bounds = array<i64: 1, 128>}, {transform_indices = @transform_6, window_bounds = array<i64: 1, 1>}, {transform_indices = @transform_7, window_bounds = array<i64: 8, 1>}]} {
    %c0 = arith.constant 0 : index
    %c0_0 = arith.constant 0 : index
    %0 = vector.load %arg1[%c0, %c0_0] : memref<8x1600xf32, #tpu.memory_space<vmem>>, vector<8x1600xf32>
    %1 = arith.truncf %0 : vector<8x1600xf32> to vector<8x1600xbf16>
    %c0_1 = arith.constant 0 : index
    %c0_2 = arith.constant 0 : index
    %2 = vector.load %arg2[%c0_1, %c0_2] : memref<1600x384xbf16, #tpu.memory_space<vmem>>, vector<1600x384xbf16>
    %cst = arith.constant dense<0.000000e+00> : vector<8x384xf32>
    %3 = tpu.matmul %1, %2, %cst {dimension_numbers = #tpu.dot_dimension_numbers<[1], [0], [0], [1], [0, 0, 1, 1], [], []>} : vector<8x1600xbf16>, vector<1600x384xbf16>, vector<8x384xf32> -> vector<8x384xf32>
    %c0_3 = arith.constant 0 : index
    %c0_4 = arith.constant 0 : index
    %4 = vector.load %arg3[%c0_3, %c0_4] : memref<1x384xf32, #tpu.memory_space<vmem>>, vector<1x384xf32>
    %5 = vector.broadcast %4 : vector<1x384xf32> to vector<8x384xf32>
    %6 = arith.addf %3, %5 : vector<8x384xf32>
    %cst_5 = arith.constant 0.000000e+00 : f32
    %7 = vector.broadcast %cst_5 : f32 to vector<8x384xf32>
    %8 = arith.cmpf oge, %6, %7 : vector<8x384xf32>
    %cst_6 = arith.constant 0.00999999977 : f32
    %9 = vector.broadcast %cst_6 : f32 to vector<8x384xf32>
    %10 = arith.mulf %9, %6 : vector<8x384xf32>
    %11 = arith.select %8, %6, %10 : vector<8x384xi1>, vector<8x384xf32>
    %12 = vector.extract_strided_slice %11 {offsets = [0, 0], sizes = [8, 128], strides = [1, 1]} : vector<8x384xf32> to vector<8x128xf32>
    %13 = arith.truncf %12 : vector<8x128xf32> to vector<8x128xbf16>
    %c0_7 = arith.constant 0 : index
    %c0_8 = arith.constant 0 : index
    %c0_9 = arith.constant 0 : index
    %14 = vector.load %arg4[%c0_7, %c0_8, %c0_9] : memref<3x128x128xbf16, #tpu.memory_space<vmem>>, vector<1x128x128xbf16>
    %15 = vector.shape_cast %14 : vector<1x128x128xbf16> to vector<128x128xbf16>
    %cst_10 = arith.constant dense<0.000000e+00> : vector<8x128xf32>
    %16 = tpu.matmul %13, %15, %cst_10 {dimension_numbers = #tpu.dot_dimension_numbers<[1], [0], [0], [1], [0, 0, 1, 1], [], []>} : vector<8x128xbf16>, vector<128x128xbf16>, vector<8x128xf32> -> vector<8x128xf32>
    %c0_11 = arith.constant 0 : index
    %c0_12 = arith.constant 0 : index
    %17 = vector.load %arg5[%c0_11, %c0_12] : memref<3x128xf32, #tpu.memory_space<vmem>>, vector<1x128xf32>
    %18 = vector.shape_cast %17 : vector<1x128xf32> to vector<128xf32>
    %19 = vector.shape_cast %18 : vector<128xf32> to vector<1x128xf32>
    %20 = vector.broadcast %19 : vector<1x128xf32> to vector<8x128xf32>
    %21 = arith.addf %16, %20 : vector<8x128xf32>
    %cst_13 = arith.constant 0.000000e+00 : f32
    %22 = vector.broadcast %cst_13 : f32 to vector<8x128xf32>
    %23 = arith.cmpf oge, %21, %22 : vector<8x128xf32>
    %cst_14 = arith.constant 0.00999999977 : f32
    %24 = vector.broadcast %cst_14 : f32 to vector<8x128xf32>
    %25 = arith.mulf %24, %21 : vector<8x128xf32>
    %26 = arith.select %23, %21, %25 : vector<8x128xi1>, vector<8x128xf32>
    %27 = vector.extract_strided_slice %11 {offsets = [0, 128], sizes = [8, 128], strides = [1, 1]} : vector<8x384xf32> to vector<8x128xf32>
    %28 = arith.addf %26, %27 : vector<8x128xf32>
    %29 = arith.truncf %28 : vector<8x128xf32> to vector<8x128xbf16>
    %c1 = arith.constant 1 : index
    %c0_15 = arith.constant 0 : index
    %c0_16 = arith.constant 0 : index
    %30 = vector.load %arg4[%c1, %c0_15, %c0_16] : memref<3x128x128xbf16, #tpu.memory_space<vmem>>, vector<1x128x128xbf16>
    %31 = vector.shape_cast %30 : vector<1x128x128xbf16> to vector<128x128xbf16>
    %cst_17 = arith.constant dense<0.000000e+00> : vector<8x128xf32>
    %32 = tpu.matmul %29, %31, %cst_17 {dimension_numbers = #tpu.dot_dimension_numbers<[1], [0], [0], [1], [0, 0, 1, 1], [], []>} : vector<8x128xbf16>, vector<128x128xbf16>, vector<8x128xf32> -> vector<8x128xf32>
    %c1_18 = arith.constant 1 : index
    %c0_19 = arith.constant 0 : index
    %33 = vector.load %arg5[%c1_18, %c0_19] : memref<3x128xf32, #tpu.memory_space<vmem>>, vector<1x128xf32>
    %34 = vector.shape_cast %33 : vector<1x128xf32> to vector<128xf32>
    %35 = vector.shape_cast %34 : vector<128xf32> to vector<1x128xf32>
    %36 = vector.broadcast %35 : vector<1x128xf32> to vector<8x128xf32>
    %37 = arith.addf %32, %36 : vector<8x128xf32>
    %cst_20 = arith.constant 0.000000e+00 : f32
    %38 = vector.broadcast %cst_20 : f32 to vector<8x128xf32>
    %39 = arith.cmpf oge, %37, %38 : vector<8x128xf32>
    %cst_21 = arith.constant 0.00999999977 : f32
    %40 = vector.broadcast %cst_21 : f32 to vector<8x128xf32>
    %41 = arith.mulf %40, %37 : vector<8x128xf32>
    %42 = arith.select %39, %37, %41 : vector<8x128xi1>, vector<8x128xf32>
    %43 = vector.extract_strided_slice %11 {offsets = [0, 256], sizes = [8, 128], strides = [1, 1]} : vector<8x384xf32> to vector<8x128xf32>
    %44 = arith.addf %42, %43 : vector<8x128xf32>
    %45 = arith.truncf %44 : vector<8x128xf32> to vector<8x128xbf16>
    %c2 = arith.constant 2 : index
    %c0_22 = arith.constant 0 : index
    %c0_23 = arith.constant 0 : index
    %46 = vector.load %arg4[%c2, %c0_22, %c0_23] : memref<3x128x128xbf16, #tpu.memory_space<vmem>>, vector<1x128x128xbf16>
    %47 = vector.shape_cast %46 : vector<1x128x128xbf16> to vector<128x128xbf16>
    %cst_24 = arith.constant dense<0.000000e+00> : vector<8x128xf32>
    %48 = tpu.matmul %45, %47, %cst_24 {dimension_numbers = #tpu.dot_dimension_numbers<[1], [0], [0], [1], [0, 0, 1, 1], [], []>} : vector<8x128xbf16>, vector<128x128xbf16>, vector<8x128xf32> -> vector<8x128xf32>
    %c2_25 = arith.constant 2 : index
    %c0_26 = arith.constant 0 : index
    %49 = vector.load %arg5[%c2_25, %c0_26] : memref<3x128xf32, #tpu.memory_space<vmem>>, vector<1x128xf32>
    %50 = vector.shape_cast %49 : vector<1x128xf32> to vector<128xf32>
    %51 = vector.shape_cast %50 : vector<128xf32> to vector<1x128xf32>
    %52 = vector.broadcast %51 : vector<1x128xf32> to vector<8x128xf32>
    %53 = arith.addf %48, %52 : vector<8x128xf32>
    %cst_27 = arith.constant 0.000000e+00 : f32
    %54 = vector.broadcast %cst_27 : f32 to vector<8x128xf32>
    %55 = arith.cmpf oge, %53, %54 : vector<8x128xf32>
    %cst_28 = arith.constant 0.00999999977 : f32
    %56 = vector.broadcast %cst_28 : f32 to vector<8x128xf32>
    %57 = arith.mulf %56, %53 : vector<8x128xf32>
    %58 = arith.select %55, %53, %57 : vector<8x128xi1>, vector<8x128xf32>
    %c0_29 = arith.constant 0 : index
    %c0_30 = arith.constant 0 : index
    %59 = vector.load %arg6[%c0_29, %c0_30] : memref<1x128xf32, #tpu.memory_space<vmem>>, vector<1x128xf32>
    %60 = vector.broadcast %59 : vector<1x128xf32> to vector<8x128xf32>
    %61 = arith.mulf %58, %60 : vector<8x128xf32>
    %cst_31 = arith.constant dense<0.000000e+00> : vector<8xf32>
    %62 = vector.multi_reduction <add>, %61, %cst_31 [1] : vector<8x128xf32> to vector<8xf32>
    %63 = vector.shape_cast %62 : vector<8xf32> to vector<8x1xf32>
    %c0_32 = arith.constant 0 : index
    %c0_33 = arith.constant 0 : index
    %64 = memref.load %arg7[%c0_32, %c0_33] : memref<1x1xf32, #tpu.memory_space<smem>>
    %65 = vector.broadcast %64 : f32 to vector<8x1xf32>
    %66 = arith.addf %63, %65 : vector<8x1xf32>
    %c0_34 = arith.constant 0 : index
    %c0_35 = arith.constant 0 : index
    %67 = vector.load %arg8[%c0_34, %c0_35] : memref<8x1xf32, #tpu.memory_space<vmem>>, vector<8x1xf32>
    tpu.vector_store %arg8[%c0_34, %c0_35], %66 {strides = array<i32>} : memref<8x1xf32, #tpu.memory_space<vmem>>, vector<8x1xf32>,
    return
  }
  func.func @transform_0(%arg0: i32) -> (i32, i32) {
    %c0_i32 = arith.constant 0 : i32
    %c0_i32_0 = arith.constant 0 : i32
    return %arg0, %c0_i32 : i32, i32
  }
  func.func @transform_1(%arg0: i32) -> (i32, i32) {
    %c0_i32 = arith.constant 0 : i32
    %c0_i32_0 = arith.constant 0 : i32
    %c0_i32_1 = arith.constant 0 : i32
    return %c0_i32, %c0_i32_0 : i32, i32
  }
  func.func @transform_2(%arg0: i32) -> (i32, i32) {
    %c0_i32 = arith.constant 0 : i32
    %c0_i32_0 = arith.constant 0 : i32
    %c0_i32_1 = arith.constant 0 : i32
    return %c0_i32, %c0_i32_0 : i32, i32
  }
  func.func @transform_3(%arg0: i32) -> (i32, i32, i32) {
    %c0_i32 = arith.constant 0 : i32
    %c0_i32_0 = arith.constant 0 : i32
    %c0_i32_1 = arith.constant 0 : i32
    %c0_i32_2 = arith.constant 0 : i32
    return %c0_i32, %c0_i32_0, %c0_i32_1 : i32, i32, i32
  }
  func.func @transform_4(%arg0: i32) -> (i32, i32) {
    %c0_i32 = arith.constant 0 : i32
    %c0_i32_0 = arith.constant 0 : i32
    %c0_i32_1 = arith.constant 0 : i32
    return %c0_i32, %c0_i32_0 : i32, i32
  }
  func.func @transform_5(%arg0: i32) -> (i32, i32) {
    %c0_i32 = arith.constant 0 : i32
    %c0_i32_0 = arith.constant 0 : i32
    %c0_i32_1 = arith.constant 0 : i32
    return %c0_i32, %c0_i32_0 : i32, i32
  }
  func.func @transform_6(%arg0: i32) -> (i32, i32) {
    %c0_i32 = arith.constant 0 : i32
    %c0_i32_0 = arith.constant 0 : i32
    %c0_i32_1 = arith.constant 0 : i32
    return %c0_i32, %c0_i32_0 : i32, i32
  }
  func.func @transform_7(%arg0: i32) -> (i32, i32) {
    %c0_i32 = arith.constant 0 : i32
    %c0_i32_0 = arith.constant 0 : i32
    return %arg0, %c0_i32 : i32, i32
  }
}

</mosaic_0001>

<llo_original>
// kernel: chess_resnet_forward.1
$region0: #{chess_resnet_forward.1}
  #allocation0 [shape = 'u32[]', space=smem, size = 0x4, offset = 0x4, fixed_abs, tag = 'smem constant byte address 0x4 - core index']
  #allocation1 [shape = 'u32[144,128]{1,0:T(1,128)}', space=vmem, size = 0x12000, scoped, tag = 'internal scratch']
  #allocation2 [shape = 'f32[1,1]{1,0:T(1,128)S(6)}', space=smem, size = 0x200, scoped, tag = 'scoped memory for chess_resnet_forward.1']
  %s0 = inlined_call_operand.vmem [shape: f32[2,1600], index: 0, kind: input, shape index: {}]
  %s1 = inlined_call_operand.vmem [shape: bf16[1600,384], index: 1, kind: input, shape index: {}]
  %s2 = inlined_call_operand.vmem [shape: f32[1,384], index: 2, kind: input, shape index: {}]
  %s3 = inlined_call_operand.vmem [shape: bf16[3,128,128], index: 3, kind: input, shape index: {}]
  %s4 = inlined_call_operand.vmem [shape: f32[3,128], index: 4, kind: input, shape index: {}]
  %s5 = inlined_call_operand.vmem [shape: f32[1,128], index: 5, kind: input, shape index: {}]
  %s6 = inlined_call_operand.<no memory space> [shape: f32[1,1], index: 6, kind: input, shape index: {}]
  %s7 = inlined_call_operand.vmem [shape: f32[2,1], index: 7, kind: output, shape index: {}]
  %s8 = sld [smem:[#allocation0]]
  $region68: #{chess_resnet_forward.1} parent=0
    _
  %s10 = ssub.s32 1, %s8
  %s11 = scalar_select 0, %s10, %s8
  %12 = sst [smem:[#allocation2]] %s6
  $region1: #{chess_resnet_forward.1} parent=0
    #allocation3 [shape = 'u8[4096]{0}', space=vmem, size = 0x1000, scoped, tag = 'output window, operand 0, single buffered']
    // Predicated region
    $region2: #{chess_resnet_forward.1} parent=1 // pred_check
      _
    $region3: #{chess_resnet_forward.1} parent=1 // pred_check_branch
      %14 = sbr.rel (0) target = $region5
    $region4: #{chess_resnet_forward.1} parent=1 // pred_region
      _
    $region5: #{chess_resnet_forward.1} parent=1 // pred_fallthru
      _
    // Predicated region
    $region6: #{chess_resnet_forward.1} parent=1 // pred_check
      _
    $region7: #{chess_resnet_forward.1} parent=1 // pred_check_branch
      %16 = sbr.rel (0) target = $region9
    $region8: #{chess_resnet_forward.1} parent=1 // pred_region
      _
    $region9: #{chess_resnet_forward.1} parent=1 // pred_fallthru
      _
    // Predicated region
    $region10: #{chess_resnet_forward.1} parent=1 // pred_check
      _
    $region11: #{chess_resnet_forward.1} parent=1 // pred_check_branch
      %18 = sbr.rel (0) target = $region13
    $region12: #{chess_resnet_forward.1} parent=1 // pred_region
      _
    $region13: #{chess_resnet_forward.1} parent=1 // pred_fallthru
      _
    // Predicated region
    $region14: #{chess_resnet_forward.1} parent=1 // pred_check
      _
    $region15: #{chess_resnet_forward.1} parent=1 // pred_check_branch
      %20 = sbr.rel (0) target = $region17
    $region16: #{chess_resnet_forward.1} parent=1 // pred_region
      _
    $region17: #{chess_resnet_forward.1} parent=1 // pred_fallthru
      _
    // Predicated region
    $region18: #{chess_resnet_forward.1} parent=1 // pred_check
      _
    $region19: #{chess_resnet_forward.1} parent=1 // pred_check_branch
      %22 = sbr.rel (0) target = $region21
    $region20: #{chess_resnet_forward.1} parent=1 // pred_region
      _
    $region21: #{chess_resnet_forward.1} parent=1 // pred_fallthru
      _
    // Predicated region
    $region22: #{chess_resnet_forward.1} parent=1 // pred_check
      _
    $region23: #{chess_resnet_forward.1} parent=1 // pred_check_branch
      %24 = sbr.rel (0) target = $region25
    $region24: #{chess_resnet_forward.1} parent=1 // pred_region
      _
    $region25: #{chess_resnet_forward.1} parent=1 // pred_fallthru
      _
    // Predicated region
    $region26: #{chess_resnet_forward.1} parent=1 // pred_check
      _
    $region27: #{chess_resnet_forward.1} parent=1 // pred_check_branch
      %26 = sbr.rel (0) target = $region29
    $region28: #{chess_resnet_forward.1} parent=1 // pred_region
      _
    $region29: #{chess_resnet_forward.1} parent=1 // pred_fallthru
      _
    %v28 = vld [vmem:[%s0] sm:$0xff]
    %v29 = vld [vmem:[%s0 + $0x8] sm:$0xff]
    %v30 = vld [vmem:[%s0 + $0x10] sm:$0xff]
    %v31 = vld [vmem:[%s0 + $0x18] sm:$0x3]
    %v32 = vld [vmem:[%s0 + $0x1a] sm:$0xff]
    %v33 = vld [vmem:[%s0 + $0x22] sm:$0xff]
    %v34 = vld [vmem:[%s0 + $0x2a] sm:$0xff]
    %v35 = vld [vmem:[%s0 + $0x32] sm:$0x3]
    %v36 = vld [vmem:[%s0 + $0x34] sm:$0xff]
    %v37 = vld [vmem:[%s0 + $0x3c] sm:$0xff]
    %v38 = vld [vmem:[%s0 + $0x44] sm:$0xff]
    %v39 = vld [vmem:[%s0 + $0x4c] sm:$0x3]
    %v40 = vld [vmem:[%s0 + $0x4e] sm:$0xff]
    %v41 = vld [vmem:[%s0 + $0x56] sm:$0xff]
    %v42 = vld [vmem:[%s0 + $0x5e] sm:$0xff]
    %v43 = vld [vmem:[%s0 + $0x66] sm:$0x3]
    %v60 = vcombine.low %v28, %v32
    %v61 = vcombine.high %v28, %v32
    %v62 = vcombine.low %v36, %v40
    %v63 = vcombine.high %v36, %v40
    %v65 = vunpack.c.l.s4 1983009808
    %v66 = vunpack.c.0.s8 %v65
    %v67 = vlaneseq
    %v68 = vshrl.u32 %v67, 7
    %v69 = vsub.s32 %v66, %v68
    %v70 = vrot.slane %v60, %v69
    %v72 = vunpack.c.l.s4 1983009808
    %v73 = vunpack.c.0.s8 %v72
    %v74 = vlaneseq
    %v75 = vshrl.u32 %v74, 7
    %v76 = vsub.s32 %v73, %v75
    %v77 = vrot.slane %v61, %v76
    %v79 = vunpack.c.l.s4 1983009808
    %v80 = vunpack.c.0.s8 %v79
    %v81 = vlaneseq
    %v82 = vshrl.u32 %v81, 7
    %v83 = vsub.s32 %v80, %v82
    %v84 = vrot.slane %v62, %v83
    %v86 = vunpack.c.l.s4 1983009808
    %v87 = vunpack.c.0.s8 %v86
    %v88 = vlaneseq
    %v89 = vshrl.u32 %v88, 7
    %v90 = vsub.s32 %v87, %v89
    %v91 = vrot.slane %v63, %v90
    %v92 = vcombine.low %v70, %v84
    %v93 = vcombine.high %v70, %v84
    %v94 = vcombine.low %v77, %v91
    %v95 = vcombine.high %v77, %v91
    %v96 = vcombine.low %v29, %v33
    %v97 = vcombine.high %v29, %v33
    %v98 = vcombine.low %v37, %v41
    %v99 = vcombine.high %v37, %v41
    %v101 = vunpack.c.l.s4 1983009808
    %v102 = vunpack.c.0.s8 %v101
    %v103 = vlaneseq
    %v104 = vshrl.u32 %v103, 7
    %v105 = vsub.s32 %v102, %v104
    %v106 = vrot.slane %v96, %v105
    %v108 = vunpack.c.l.s4 1983009808
    %v109 = vunpack.c.0.s8 %v108
    %v110 = vlaneseq
    %v111 = vshrl.u32 %v110, 7
    %v112 = vsub.s32 %v109, %v111
    %v113 = vrot.slane %v97, %v112
    %v115 = vunpack.c.l.s4 1983009808
    %v116 = vunpack.c.0.s8 %v115
    %v117 = vlaneseq
    %v118 = vshrl.u32 %v117, 7
    %v119 = vsub.s32 %v116, %v118
    %v120 = vrot.slane %v98, %v119
    %v122 = vunpack.c.l.s4 1983009808
    %v123 = vunpack.c.0.s8 %v122
    %v124 = vlaneseq
    %v125 = vshrl.u32 %v124, 7
    %v126 = vsub.s32 %v123, %v125
    %v127 = vrot.slane %v99, %v126
    %v128 = vcombine.low %v106, %v120
    %v129 = vcombine.high %v106, %v120
    %v130 = vcombine.low %v113, %v127
    %v131 = vcombine.high %v113, %v127
    %v132 = vcombine.low %v30, %v34
    %v133 = vcombine.high %v30, %v34
    %v134 = vcombine.low %v38, %v42
    %v135 = vcombine.high %v38, %v42
    %v137 = vunpack.c.l.s4 1983009808
    %v138 = vunpack.c.0.s8 %v137
    %v139 = vlaneseq
    %v140 = vshrl.u32 %v139, 7
    %v141 = vsub.s32 %v138, %v140
    %v142 = vrot.slane %v132, %v141
    %v144 = vunpack.c.l.s4 1983009808
    %v145 = vunpack.c.0.s8 %v144
    %v146 = vlaneseq
    %v147 = vshrl.u32 %v146, 7
    %v148 = vsub.s32 %v145, %v147
    %v149 = vrot.slane %v133, %v148
    %v151 = vunpack.c.l.s4 1983009808
    %v152 = vunpack.c.0.s8 %v151
    %v153 = vlaneseq
    %v154 = vshrl.u32 %v153, 7
    %v155 = vsub.s32 %v152, %v154
    %v156 = vrot.slane %v134, %v155
    %v158 = vunpack.c.l.s4 1983009808
    %v159 = vunpack.c.0.s8 %v158
    %v160 = vlaneseq
    %v161 = vshrl.u32 %v160, 7
    %v162 = vsub.s32 %v159, %v161
    %v163 = vrot.slane %v135, %v162
    %v164 = vcombine.low %v142, %v156
    %v165 = vcombine.high %v142, %v156
    %v166 = vcombine.low %v149, %v163
    %v167 = vcombine.high %v149, %v163
    %v168 = vcombine.low %v31, %v35
    %v169 = vcombine.low %v39, %v43
    %v171 = vunpack.c.l.s4 1983009808
    %v172 = vunpack.c.0.s8 %v171
    %v173 = vlaneseq
    %v174 = vshrl.u32 %v173, 7
    %v175 = vsub.s32 %v172, %v174
    %v176 = vrot.slane %v168, %v175
    %v178 = vunpack.c.l.s4 1983009808
    %v179 = vunpack.c.0.s8 %v178
    %v180 = vlaneseq
    %v181 = vshrl.u32 %v180, 7
    %v182 = vsub.s32 %v179, %v181
    %v183 = vrot.slane %v169, %v182
    %v184 = vcombine.low %v176, %v183
    %v198 = vpack.c.bf16 %v92, %v92
    %v199 = vpack.c.bf16 %v93, %v93
    %v200 = vpack.c.bf16 %v94, %v94
    %v201 = vpack.c.bf16 %v95, %v95
    %v202 = vpack.c.bf16 %v128, %v128
    %v203 = vpack.c.bf16 %v129, %v129
    %v204 = vpack.c.bf16 %v130, %v130
    %v205 = vpack.c.bf16 %v131, %v131
    %v206 = vpack.c.bf16 %v164, %v164
    %v207 = vpack.c.bf16 %v165, %v165
    %v208 = vpack.c.bf16 %v166, %v166
    %v209 = vpack.c.bf16 %v167, %v167
    %v210 = vpack.c.bf16 %v184, %v184
    %v211 = vld [vmem:[%s1] sm:$0xff]
    %v212 = vld [vmem:[%s1 + $0x8] sm:$0xf]
    %v213 = vld [vmem:[%s1 + $0xc] sm:$0xff]
    %v214 = vld [vmem:[%s1 + $0x14] sm:$0xf]
    %v215 = vld [vmem:[%s1 + $0x18] sm:$0xff]
    %v216 = vld [vmem:[%s1 + $0x20] sm:$0xf]
    %v217 = vld [vmem:[%s1 + $0x24] sm:$0xff]
    %v218 = vld [vmem:[%s1 + $0x2c] sm:$0xf]
    %v219 = vld [vmem:[%s1 + $0x30] sm:$0xff]
    %v220 = vld [vmem:[%s1 + $0x38] sm:$0xf]
    %v221 = vld [vmem:[%s1 + $0x3c] sm:$0xff]
    %v222 = vld [vmem:[%s1 + $0x44] sm:$0xf]
    %v223 = vld [vmem:[%s1 + $0x48] sm:$0xff]
    %v224 = vld [vmem:[%s1 + $0x50] sm:$0xf]
    %v225 = vld [vmem:[%s1 + $0x54] sm:$0xff]
    %v226 = vld [vmem:[%s1 + $0x5c] sm:$0xf]
    %v227 = vld [vmem:[%s1 + $0x60] sm:$0xff]
    %v228 = vld [vmem:[%s1 + $0x68] sm:$0xf]
    %v229 = vld [vmem:[%s1 + $0x6c] sm:$0xff]
    %v230 = vld [vmem:[%s1 + $0x74] sm:$0xf]
    %v231 = vld [vmem:[%s1 + $0x78] sm:$0xff]
    %v232 = vld [vmem:[%s1 + $0x80] sm:$0xf]
    %v233 = vld [vmem:[%s1 + $0x84] sm:$0xff]
    %v234 = vld [vmem:[%s1 + $0x8c] sm:$0xf]
    %v235 = vld [vmem:[%s1 + $0x90] sm:$0xff]
    %v236 = vld [vmem:[%s1 + $0x98] sm:$0xf]
    %v237 = vld [vmem:[%s1 + $0x9c] sm:$0xff]
    %v238 = vld [vmem:[%s1 + $0xa4] sm:$0xf]
    %v239 = vld [vmem:[%s1 + $0xa8] sm:$0xff]
    %v240 = vld [vmem:[%s1 + $0xb0] sm:$0xf]
    %v241 = vld [vmem:[%s1 + $0xb4] sm:$0xff]
    %v242 = vld [vmem:[%s1 + $0xbc] sm:$0xf]
    %v243 = vld [vmem:[%s1 + $0xc0] sm:$0xff]
    %v244 = vld [vmem:[%s1 + $0xc8] sm:$0xf]
    %v245 = vld [vmem:[%s1 + $0xcc] sm:$0xff]
    %v246 = vld [vmem:[%s1 + $0xd4] sm:$0xf]
    %v247 = vld [vmem:[%s1 + $0xd8] sm:$0xff]
    %v248 = vld [vmem:[%s1 + $0xe0] sm:$0xf]
    %v249 = vld [vmem:[%s1 + $0xe4] sm:$0xff]
    %v250 = vld [vmem:[%s1 + $0xec] sm:$0xf]
    %v251 = vld [vmem:[%s1 + $0xf0] sm:$0xff]
    %v252 = vld [vmem:[%s1 + $0xf8] sm:$0xf]
    %v253 = vld [vmem:[%s1 + $0xfc] sm:$0xff]
    %v254 = vld [vmem:[%s1 + $0x104] sm:$0xf]
    %v255 = vld [vmem:[%s1 + $0x108] sm:$0xff]
    %v256 = vld [vmem:[%s1 + $0x110] sm:$0xf]
    %v257 = vld [vmem:[%s1 + $0x114] sm:$0xff]
    %v258 = vld [vmem:[%s1 + $0x11c] sm:$0xf]
    %v259 = vld [vmem:[%s1 + $0x120] sm:$0xff]
    %v260 = vld [vmem:[%s1 + $0x128] sm:$0xf]
    %v261 = vld [vmem:[%s1 + $0x12c] sm:$0xff]
    %v262 = vld [vmem:[%s1 + $0x134] sm:$0xf]
    %v263 = vld [vmem:[%s1 + $0x138] sm:$0xff]
    %v264 = vld [vmem:[%s1 + $0x140] sm:$0xf]
    %v265 = vld [vmem:[%s1 + $0x144] sm:$0xff]
    %v266 = vld [vmem:[%s1 + $0x14c] sm:$0xf]
    %v267 = vld [vmem:[%s1 + $0x150] sm:$0xff]
    %v268 = vld [vmem:[%s1 + $0x158] sm:$0xf]
    %v269 = vld [vmem:[%s1 + $0x15c] sm:$0xff]
    %v270 = vld [vmem:[%s1 + $0x164] sm:$0xf]
    %v271 = vld [vmem:[%s1 + $0x168] sm:$0xff]
    %v272 = vld [vmem:[%s1 + $0x170] sm:$0xf]
    %v273 = vld [vmem:[%s1 + $0x174] sm:$0xff]
    %v274 = vld [vmem:[%s1 + $0x17c] sm:$0xf]
    %v275 = vld [vmem:[%s1 + $0x180] sm:$0xff]
    %v276 = vld [vmem:[%s1 + $0x188] sm:$0xf]
    %v277 = vld [vmem:[%s1 + $0x18c] sm:$0xff]
    %v278 = vld [vmem:[%s1 + $0x194] sm:$0xf]
    %v279 = vld [vmem:[%s1 + $0x198] sm:$0xff]
    %v280 = vld [vmem:[%s1 + $0x1a0] sm:$0xf]
    %v281 = vld [vmem:[%s1 + $0x1a4] sm:$0xff]
    %v282 = vld [vmem:[%s1 + $0x1ac] sm:$0xf]
    %v283 = vld [vmem:[%s1 + $0x1b0] sm:$0xff]
    %v284 = vld [vmem:[%s1 + $0x1b8] sm:$0xf]
    %v285 = vld [vmem:[%s1 + $0x1bc] sm:$0xff]
    %v286 = vld [vmem:[%s1 + $0x1c4] sm:$0xf]
    %v287 = vld [vmem:[%s1 + $0x1c8] sm:$0xff]
    %v288 = vld [vmem:[%s1 + $0x1d0] sm:$0xf]
    %v289 = vld [vmem:[%s1 + $0x1d4] sm:$0xff]
    %v290 = vld [vmem:[%s1 + $0x1dc] sm:$0xf]
    %v291 = vld [vmem:[%s1 + $0x1e0] sm:$0xff]
    %v292 = vld [vmem:[%s1 + $0x1e8] sm:$0xf]
    %v293 = vld [vmem:[%s1 + $0x1ec] sm:$0xff]
    %v294 = vld [vmem:[%s1 + $0x1f4] sm:$0xf]
    %v295 = vld [vmem:[%s1 + $0x1f8] sm:$0xff]
    %v296 = vld [vmem:[%s1 + $0x200] sm:$0xf]
    %v297 = vld [vmem:[%s1 + $0x204] sm:$0xff]
    %v298 = vld [vmem:[%s1 + $0x20c] sm:$0xf]
    %v299 = vld [vmem:[%s1 + $0x210] sm:$0xff]
    %v300 = vld [vmem:[%s1 + $0x218] sm:$0xf]
    %v301 = vld [vmem:[%s1 + $0x21c] sm:$0xff]
    %v302 = vld [vmem:[%s1 + $0x224] sm:$0xf]
    %v303 = vld [vmem:[%s1 + $0x228] sm:$0xff]
    %v304 = vld [vmem:[%s1 + $0x230] sm:$0xf]
    %v305 = vld [vmem:[%s1 + $0x234] sm:$0xff]
    %v306 = vld [vmem:[%s1 + $0x23c] sm:$0xf]
    %v307 = vld [vmem:[%s1 + $0x240] sm:$0xff]
    %v308 = vld [vmem:[%s1 + $0x248] sm:$0xf]
    %v309 = vld [vmem:[%s1 + $0x24c] sm:$0xff]
    %v310 = vld [vmem:[%s1 + $0x254] sm:$0xf]
    %v311 = vld [vmem:[%s1 + $0x258] sm:$0xff]
    %v312 = vld [vmem:[%s1 + $0x260] sm:$0xf]
    %v313 = vld [vmem:[%s1 + $0x264] sm:$0xff]
    %v314 = vld [vmem:[%s1 + $0x26c] sm:$0xf]
    %v315 = vld [vmem:[%s1 + $0x270] sm:$0xff]
    %v316 = vld [vmem:[%s1 + $0x278] sm:$0xf]
    %v317 = vld [vmem:[%s1 + $0x27c] sm:$0xff]
    %v318 = vld [vmem:[%s1 + $0x284] sm:$0xf]
    %v319 = vld [vmem:[%s1 + $0x288] sm:$0xff]
    %v320 = vld [vmem:[%s1 + $0x290] sm:$0xf]
    %v321 = vld [vmem:[%s1 + $0x294] sm:$0xff]
    %v322 = vld [vmem:[%s1 + $0x29c] sm:$0xf]
    %v323 = vld [vmem:[%s1 + $0x2a0] sm:$0xff]
    %v324 = vld [vmem:[%s1 + $0x2a8] sm:$0xf]
    %v325 = vld [vmem:[%s1 + $0x2ac] sm:$0xff]
    %v326 = vld [vmem:[%s1 + $0x2b4] sm:$0xf]
    %v327 = vld [vmem:[%s1 + $0x2b8] sm:$0xff]
    %v328 = vld [vmem:[%s1 + $0x2c0] sm:$0xf]
    %v329 = vld [vmem:[%s1 + $0x2c4] sm:$0xff]
    %v330 = vld [vmem:[%s1 + $0x2cc] sm:$0xf]
    %v331 = vld [vmem:[%s1 + $0x2d0] sm:$0xff]
    %v332 = vld [vmem:[%s1 + $0x2d8] sm:$0xf]
    %v333 = vld [vmem:[%s1 + $0x2dc] sm:$0xff]
    %v334 = vld [vmem:[%s1 + $0x2e4] sm:$0xf]
    %v335 = vld [vmem:[%s1 + $0x2e8] sm:$0xff]
    %v336 = vld [vmem:[%s1 + $0x2f0] sm:$0xf]
    %v337 = vld [vmem:[%s1 + $0x2f4] sm:$0xff]
    %v338 = vld [vmem:[%s1 + $0x2fc] sm:$0xf]
    %v339 = vld [vmem:[%s1 + $0x300] sm:$0xff]
    %v340 = vld [vmem:[%s1 + $0x308] sm:$0xf]
    %v341 = vld [vmem:[%s1 + $0x30c] sm:$0xff]
    %v342 = vld [vmem:[%s1 + $0x314] sm:$0xf]
    %v343 = vld [vmem:[%s1 + $0x318] sm:$0xff]
    %v344 = vld [vmem:[%s1 + $0x320] sm:$0xf]
    %v345 = vld [vmem:[%s1 + $0x324] sm:$0xff]
    %v346 = vld [vmem:[%s1 + $0x32c] sm:$0xf]
    %v347 = vld [vmem:[%s1 + $0x330] sm:$0xff]
    %v348 = vld [vmem:[%s1 + $0x338] sm:$0xf]
    %v349 = vld [vmem:[%s1 + $0x33c] sm:$0xff]
    %v350 = vld [vmem:[%s1 + $0x344] sm:$0xf]
    %v351 = vld [vmem:[%s1 + $0x348] sm:$0xff]
    %v352 = vld [vmem:[%s1 + $0x350] sm:$0xf]
    %v353 = vld [vmem:[%s1 + $0x354] sm:$0xff]
    %v354 = vld [vmem:[%s1 + $0x35c] sm:$0xf]
    %v355 = vld [vmem:[%s1 + $0x360] sm:$0xff]
    %v356 = vld [vmem:[%s1 + $0x368] sm:$0xf]
    %v357 = vld [vmem:[%s1 + $0x36c] sm:$0xff]
    %v358 = vld [vmem:[%s1 + $0x374] sm:$0xf]
    %v359 = vld [vmem:[%s1 + $0x378] sm:$0xff]
    %v360 = vld [vmem:[%s1 + $0x380] sm:$0xf]
    %v361 = vld [vmem:[%s1 + $0x384] sm:$0xff]
    %v362 = vld [vmem:[%s1 + $0x38c] sm:$0xf]
    %v363 = vld [vmem:[%s1 + $0x390] sm:$0xff]
    %v364 = vld [vmem:[%s1 + $0x398] sm:$0xf]
    %v365 = vld [vmem:[%s1 + $0x39c] sm:$0xff]
    %v366 = vld [vmem:[%s1 + $0x3a4] sm:$0xf]
    %v367 = vld [vmem:[%s1 + $0x3a8] sm:$0xff]
    %v368 = vld [vmem:[%s1 + $0x3b0] sm:$0xf]
    %v369 = vld [vmem:[%s1 + $0x3b4] sm:$0xff]
    %v370 = vld [vmem:[%s1 + $0x3bc] sm:$0xf]
    %v371 = vld [vmem:[%s1 + $0x3c0] sm:$0xff]
    %v372 = vld [vmem:[%s1 + $0x3c8] sm:$0xf]
    %v373 = vld [vmem:[%s1 + $0x3cc] sm:$0xff]
    %v374 = vld [vmem:[%s1 + $0x3d4] sm:$0xf]
    %v375 = vld [vmem:[%s1 + $0x3d8] sm:$0xff]
    %v376 = vld [vmem:[%s1 + $0x3e0] sm:$0xf]
    %v377 = vld [vmem:[%s1 + $0x3e4] sm:$0xff]
    %v378 = vld [vmem:[%s1 + $0x3ec] sm:$0xf]
    %v379 = vld [vmem:[%s1 + $0x3f0] sm:$0xff]
    %v380 = vld [vmem:[%s1 + $0x3f8] sm:$0xf]
    %v381 = vld [vmem:[%s1 + $0x3fc] sm:$0xff]
    %v382 = vld [vmem:[%s1 + $0x404] sm:$0xf]
    %v383 = vld [vmem:[%s1 + $0x408] sm:$0xff]
    %v384 = vld [vmem:[%s1 + $0x410] sm:$0xf]
    %v385 = vld [vmem:[%s1 + $0x414] sm:$0xff]
    %v386 = vld [vmem:[%s1 + $0x41c] sm:$0xf]
    %v387 = vld [vmem:[%s1 + $0x420] sm:$0xff]
    %v388 = vld [vmem:[%s1 + $0x428] sm:$0xf]
    %v389 = vld [vmem:[%s1 + $0x42c] sm:$0xff]
    %v390 = vld [vmem:[%s1 + $0x434] sm:$0xf]
    %v391 = vld [vmem:[%s1 + $0x438] sm:$0xff]
    %v392 = vld [vmem:[%s1 + $0x440] sm:$0xf]
    %v393 = vld [vmem:[%s1 + $0x444] sm:$0xff]
    %v394 = vld [vmem:[%s1 + $0x44c] sm:$0xf]
    %v395 = vld [vmem:[%s1 + $0x450] sm:$0xff]
    %v396 = vld [vmem:[%s1 + $0x458] sm:$0xf]
    %v397 = vld [vmem:[%s1 + $0x45c] sm:$0xff]
    %v398 = vld [vmem:[%s1 + $0x464] sm:$0xf]
    %v399 = vld [vmem:[%s1 + $0x468] sm:$0xff]
    %v400 = vld [vmem:[%s1 + $0x470] sm:$0xf]
    %v401 = vld [vmem:[%s1 + $0x474] sm:$0xff]
    %v402 = vld [vmem:[%s1 + $0x47c] sm:$0xf]
    %v403 = vld [vmem:[%s1 + $0x480] sm:$0xff]
    %v404 = vld [vmem:[%s1 + $0x488] sm:$0xf]
    %v405 = vld [vmem:[%s1 + $0x48c] sm:$0xff]
    %v406 = vld [vmem:[%s1 + $0x494] sm:$0xf]
    %v407 = vld [vmem:[%s1 + $0x498] sm:$0xff]
    %v408 = vld [vmem:[%s1 + $0x4a0] sm:$0xf]
    %v409 = vld [vmem:[%s1 + $0x4a4] sm:$0xff]
    %v410 = vld [vmem:[%s1 + $0x4ac] sm:$0xf]
    %v411 = vld [vmem:[%s1 + $0x4b0] sm:$0xff]
    %v412 = vld [vmem:[%s1 + $0x4b8] sm:$0xf]
    %v413 = vld [vmem:[%s1 + $0x4bc] sm:$0xff]
    %v414 = vld [vmem:[%s1 + $0x4c4] sm:$0xf]
    %v415 = vld [vmem:[%s1 + $0x4c8] sm:$0xff]
    %v416 = vld [vmem:[%s1 + $0x4d0] sm:$0xf]
    %v417 = vld [vmem:[%s1 + $0x4d4] sm:$0xff]
    %v418 = vld [vmem:[%s1 + $0x4dc] sm:$0xf]
    %v419 = vld [vmem:[%s1 + $0x4e0] sm:$0xff]
    %v420 = vld [vmem:[%s1 + $0x4e8] sm:$0xf]
    %v421 = vld [vmem:[%s1 + $0x4ec] sm:$0xff]
    %v422 = vld [vmem:[%s1 + $0x4f4] sm:$0xf]
    %v423 = vld [vmem:[%s1 + $0x4f8] sm:$0xff]
    %v424 = vld [vmem:[%s1 + $0x500] sm:$0xf]
    %v425 = vld [vmem:[%s1 + $0x504] sm:$0xff]
    %v426 = vld [vmem:[%s1 + $0x50c] sm:$0xf]
    %v427 = vld [vmem:[%s1 + $0x510] sm:$0xff]
    %v428 = vld [vmem:[%s1 + $0x518] sm:$0xf]
    %v429 = vld [vmem:[%s1 + $0x51c] sm:$0xff]
    %v430 = vld [vmem:[%s1 + $0x524] sm:$0xf]
    %v431 = vld [vmem:[%s1 + $0x528] sm:$0xff]
    %v432 = vld [vmem:[%s1 + $0x530] sm:$0xf]
    %v433 = vld [vmem:[%s1 + $0x534] sm:$0xff]
    %v434 = vld [vmem:[%s1 + $0x53c] sm:$0xf]
    %v435 = vld [vmem:[%s1 + $0x540] sm:$0xff]
    %v436 = vld [vmem:[%s1 + $0x548] sm:$0xf]
    %v437 = vld [vmem:[%s1 + $0x54c] sm:$0xff]
    %v438 = vld [vmem:[%s1 + $0x554] sm:$0xf]
    %v439 = vld [vmem:[%s1 + $0x558] sm:$0xff]
    %v440 = vld [vmem:[%s1 + $0x560] sm:$0xf]
    %v441 = vld [vmem:[%s1 + $0x564] sm:$0xff]
    %v442 = vld [vmem:[%s1 + $0x56c] sm:$0xf]
    %v443 = vld [vmem:[%s1 + $0x570] sm:$0xff]
    %v444 = vld [vmem:[%s1 + $0x578] sm:$0xf]
    %v445 = vld [vmem:[%s1 + $0x57c] sm:$0xff]
    %v446 = vld [vmem:[%s1 + $0x584] sm:$0xf]
    %v447 = vld [vmem:[%s1 + $0x588] sm:$0xff]
    %v448 = vld [vmem:[%s1 + $0x590] sm:$0xf]
    %v449 = vld [vmem:[%s1 + $0x594] sm:$0xff]
    %v450 = vld [vmem:[%s1 + $0x59c] sm:$0xf]
    %v451 = vld [vmem:[%s1 + $0x5a0] sm:$0xff]
    %v452 = vld [vmem:[%s1 + $0x5a8] sm:$0xf]
    %v453 = vld [vmem:[%s1 + $0x5ac] sm:$0xff]
    %v454 = vld [vmem:[%s1 + $0x5b4] sm:$0xf]
    %v455 = vld [vmem:[%s1 + $0x5b8] sm:$0xff]
    %v456 = vld [vmem:[%s1 + $0x5c0] sm:$0xf]
    %v457 = vld [vmem:[%s1 + $0x5c4] sm:$0xff]
    %v458 = vld [vmem:[%s1 + $0x5cc] sm:$0xf]
    %v459 = vld [vmem:[%s1 + $0x5d0] sm:$0xff]
    %v460 = vld [vmem:[%s1 + $0x5d8] sm:$0xf]
    %v461 = vld [vmem:[%s1 + $0x5dc] sm:$0xff]
    %v462 = vld [vmem:[%s1 + $0x5e4] sm:$0xf]
    %v463 = vld [vmem:[%s1 + $0x5e8] sm:$0xff]
    %v464 = vld [vmem:[%s1 + $0x5f0] sm:$0xf]
    %v465 = vld [vmem:[%s1 + $0x5f4] sm:$0xff]
    %v466 = vld [vmem:[%s1 + $0x5fc] sm:$0xf]
    %v467 = vld [vmem:[%s1 + $0x600] sm:$0xff]
    %v468 = vld [vmem:[%s1 + $0x608] sm:$0xf]
    %v469 = vld [vmem:[%s1 + $0x60c] sm:$0xff]
    %v470 = vld [vmem:[%s1 + $0x614] sm:$0xf]
    %v471 = vld [vmem:[%s1 + $0x618] sm:$0xff]
    %v472 = vld [vmem:[%s1 + $0x620] sm:$0xf]
    %v473 = vld [vmem:[%s1 + $0x624] sm:$0xff]
    %v474 = vld [vmem:[%s1 + $0x62c] sm:$0xf]
    %v475 = vld [vmem:[%s1 + $0x630] sm:$0xff]
    %v476 = vld [vmem:[%s1 + $0x638] sm:$0xf]
    %v477 = vld [vmem:[%s1 + $0x63c] sm:$0xff]
    %v478 = vld [vmem:[%s1 + $0x644] sm:$0xf]
    %v479 = vld [vmem:[%s1 + $0x648] sm:$0xff]
    %v480 = vld [vmem:[%s1 + $0x650] sm:$0xf]
    %v481 = vld [vmem:[%s1 + $0x654] sm:$0xff]
    %v482 = vld [vmem:[%s1 + $0x65c] sm:$0xf]
    %v483 = vld [vmem:[%s1 + $0x660] sm:$0xff]
    %v484 = vld [vmem:[%s1 + $0x668] sm:$0xf]
    %v485 = vld [vmem:[%s1 + $0x66c] sm:$0xff]
    %v486 = vld [vmem:[%s1 + $0x674] sm:$0xf]
    %v487 = vld [vmem:[%s1 + $0x678] sm:$0xff]
    %v488 = vld [vmem:[%s1 + $0x680] sm:$0xf]
    %v489 = vld [vmem:[%s1 + $0x684] sm:$0xff]
    %v490 = vld [vmem:[%s1 + $0x68c] sm:$0xf]
    %v491 = vld [vmem:[%s1 + $0x690] sm:$0xff]
    %v492 = vld [vmem:[%s1 + $0x698] sm:$0xf]
    %v493 = vld [vmem:[%s1 + $0x69c] sm:$0xff]
    %v494 = vld [vmem:[%s1 + $0x6a4] sm:$0xf]
    %v495 = vld [vmem:[%s1 + $0x6a8] sm:$0xff]
    %v496 = vld [vmem:[%s1 + $0x6b0] sm:$0xf]
    %v497 = vld [vmem:[%s1 + $0x6b4] sm:$0xff]
    %v498 = vld [vmem:[%s1 + $0x6bc] sm:$0xf]
    %v499 = vld [vmem:[%s1 + $0x6c0] sm:$0xff]
    %v500 = vld [vmem:[%s1 + $0x6c8] sm:$0xf]
    %v501 = vld [vmem:[%s1 + $0x6cc] sm:$0xff]
    %v502 = vld [vmem:[%s1 + $0x6d4] sm:$0xf]
    %v503 = vld [vmem:[%s1 + $0x6d8] sm:$0xff]
    %v504 = vld [vmem:[%s1 + $0x6e0] sm:$0xf]
    %v505 = vld [vmem:[%s1 + $0x6e4] sm:$0xff]
    %v506 = vld [vmem:[%s1 + $0x6ec] sm:$0xf]
    %v507 = vld [vmem:[%s1 + $0x6f0] sm:$0xff]
    %v508 = vld [vmem:[%s1 + $0x6f8] sm:$0xf]
    %v509 = vld [vmem:[%s1 + $0x6fc] sm:$0xff]
    %v510 = vld [vmem:[%s1 + $0x704] sm:$0xf]
    %v511 = vld [vmem:[%s1 + $0x708] sm:$0xff]
    %v512 = vld [vmem:[%s1 + $0x710] sm:$0xf]
    %v513 = vld [vmem:[%s1 + $0x714] sm:$0xff]
    %v514 = vld [vmem:[%s1 + $0x71c] sm:$0xf]
    %v515 = vld [vmem:[%s1 + $0x720] sm:$0xff]
    %v516 = vld [vmem:[%s1 + $0x728] sm:$0xf]
    %v517 = vld [vmem:[%s1 + $0x72c] sm:$0xff]
    %v518 = vld [vmem:[%s1 + $0x734] sm:$0xf]
    %v519 = vld [vmem:[%s1 + $0x738] sm:$0xff]
    %v520 = vld [vmem:[%s1 + $0x740] sm:$0xf]
    %v521 = vld [vmem:[%s1 + $0x744] sm:$0xff]
    %v522 = vld [vmem:[%s1 + $0x74c] sm:$0xf]
    %v523 = vld [vmem:[%s1 + $0x750] sm:$0xff]
    %v524 = vld [vmem:[%s1 + $0x758] sm:$0xf]
    %v525 = vld [vmem:[%s1 + $0x75c] sm:$0xff]
    %v526 = vld [vmem:[%s1 + $0x764] sm:$0xf]
    %v527 = vld [vmem:[%s1 + $0x768] sm:$0xff]
    %v528 = vld [vmem:[%s1 + $0x770] sm:$0xf]
    %v529 = vld [vmem:[%s1 + $0x774] sm:$0xff]
    %v530 = vld [vmem:[%s1 + $0x77c] sm:$0xf]
    %v531 = vld [vmem:[%s1 + $0x780] sm:$0xff]
    %v532 = vld [vmem:[%s1 + $0x788] sm:$0xf]
    %v533 = vld [vmem:[%s1 + $0x78c] sm:$0xff]
    %v534 = vld [vmem:[%s1 + $0x794] sm:$0xf]
    %v535 = vld [vmem:[%s1 + $0x798] sm:$0xff]
    %v536 = vld [vmem:[%s1 + $0x7a0] sm:$0xf]
    %v537 = vld [vmem:[%s1 + $0x7a4] sm:$0xff]
    %v538 = vld [vmem:[%s1 + $0x7ac] sm:$0xf]
    %v539 = vld [vmem:[%s1 + $0x7b0] sm:$0xff]
    %v540 = vld [vmem:[%s1 + $0x7b8] sm:$0xf]
    %v541 = vld [vmem:[%s1 + $0x7bc] sm:$0xff]
    %v542 = vld [vmem:[%s1 + $0x7c4] sm:$0xf]
    %v543 = vld [vmem:[%s1 + $0x7c8] sm:$0xff]
    %v544 = vld [vmem:[%s1 + $0x7d0] sm:$0xf]
    %v545 = vld [vmem:[%s1 + $0x7d4] sm:$0xff]
    %v546 = vld [vmem:[%s1 + $0x7dc] sm:$0xf]
    %v547 = vld [vmem:[%s1 + $0x7e0] sm:$0xff]
    %v548 = vld [vmem:[%s1 + $0x7e8] sm:$0xf]
    %v549 = vld [vmem:[%s1 + $0x7ec] sm:$0xff]
    %v550 = vld [vmem:[%s1 + $0x7f4] sm:$0xf]
    %v551 = vld [vmem:[%s1 + $0x7f8] sm:$0xff]
    %v552 = vld [vmem:[%s1 + $0x800] sm:$0xf]
    %v553 = vld [vmem:[%s1 + $0x804] sm:$0xff]
    %v554 = vld [vmem:[%s1 + $0x80c] sm:$0xf]
    %v555 = vld [vmem:[%s1 + $0x810] sm:$0xff]
    %v556 = vld [vmem:[%s1 + $0x818] sm:$0xf]
    %v557 = vld [vmem:[%s1 + $0x81c] sm:$0xff]
    %v558 = vld [vmem:[%s1 + $0x824] sm:$0xf]
    %v559 = vld [vmem:[%s1 + $0x828] sm:$0xff]
    %v560 = vld [vmem:[%s1 + $0x830] sm:$0xf]
    %v561 = vld [vmem:[%s1 + $0x834] sm:$0xff]
    %v562 = vld [vmem:[%s1 + $0x83c] sm:$0xf]
    %v563 = vld [vmem:[%s1 + $0x840] sm:$0xff]
    %v564 = vld [vmem:[%s1 + $0x848] sm:$0xf]
    %v565 = vld [vmem:[%s1 + $0x84c] sm:$0xff]
    %v566 = vld [vmem:[%s1 + $0x854] sm:$0xf]
    %v567 = vld [vmem:[%s1 + $0x858] sm:$0xff]
    %v568 = vld [vmem:[%s1 + $0x860] sm:$0xf]
    %v569 = vld [vmem:[%s1 + $0x864] sm:$0xff]
    %v570 = vld [vmem:[%s1 + $0x86c] sm:$0xf]
    %v571 = vld [vmem:[%s1 + $0x870] sm:$0xff]
    %v572 = vld [vmem:[%s1 + $0x878] sm:$0xf]
    %v573 = vld [vmem:[%s1 + $0x87c] sm:$0xff]
    %v574 = vld [vmem:[%s1 + $0x884] sm:$0xf]
    %v575 = vld [vmem:[%s1 + $0x888] sm:$0xff]
    %v576 = vld [vmem:[%s1 + $0x890] sm:$0xf]
    %v577 = vld [vmem:[%s1 + $0x894] sm:$0xff]
    %v578 = vld [vmem:[%s1 + $0x89c] sm:$0xf]
    %v579 = vld [vmem:[%s1 + $0x8a0] sm:$0xff]
    %v580 = vld [vmem:[%s1 + $0x8a8] sm:$0xf]
    %v581 = vld [vmem:[%s1 + $0x8ac] sm:$0xff]
    %v582 = vld [vmem:[%s1 + $0x8b4] sm:$0xf]
    %v583 = vld [vmem:[%s1 + $0x8b8] sm:$0xff]
    %v584 = vld [vmem:[%s1 + $0x8c0] sm:$0xf]
    %v585 = vld [vmem:[%s1 + $0x8c4] sm:$0xff]
    %v586 = vld [vmem:[%s1 + $0x8cc] sm:$0xf]
    %v587 = vld [vmem:[%s1 + $0x8d0] sm:$0xff]
    %v588 = vld [vmem:[%s1 + $0x8d8] sm:$0xf]
    %v589 = vld [vmem:[%s1 + $0x8dc] sm:$0xff]
    %v590 = vld [vmem:[%s1 + $0x8e4] sm:$0xf]
    %v591 = vld [vmem:[%s1 + $0x8e8] sm:$0xff]
    %v592 = vld [vmem:[%s1 + $0x8f0] sm:$0xf]
    %v593 = vld [vmem:[%s1 + $0x8f4] sm:$0xff]
    %v594 = vld [vmem:[%s1 + $0x8fc] sm:$0xf]
    %v595 = vld [vmem:[%s1 + $0x900] sm:$0xff]
    %v596 = vld [vmem:[%s1 + $0x908] sm:$0xf]
    %v597 = vld [vmem:[%s1 + $0x90c] sm:$0xff]
    %v598 = vld [vmem:[%s1 + $0x914] sm:$0xf]
    %v599 = vld [vmem:[%s1 + $0x918] sm:$0xff]
    %v600 = vld [vmem:[%s1 + $0x920] sm:$0xf]
    %v601 = vld [vmem:[%s1 + $0x924] sm:$0xff]
    %v602 = vld [vmem:[%s1 + $0x92c] sm:$0xf]
    %v603 = vld [vmem:[%s1 + $0x930] sm:$0xff]
    %v604 = vld [vmem:[%s1 + $0x938] sm:$0xf]
    %v605 = vld [vmem:[%s1 + $0x93c] sm:$0xff]
    %v606 = vld [vmem:[%s1 + $0x944] sm:$0xf]
    %v607 = vld [vmem:[%s1 + $0x948] sm:$0xff]
    %v608 = vld [vmem:[%s1 + $0x950] sm:$0xf]
    %v609 = vld [vmem:[%s1 + $0x954] sm:$0xff]
    %v610 = vld [vmem:[%s1 + $0x95c] sm:$0xf]
    %v611 = vld [vmem:[%s2] sm:$0x7]
    %v613 = vlaneseq
    %v614 = vshrl.u32 %v613, 7
    %v615 = vsub.s32 0, %v614
    %v616 = vrot.slane %v611, %v615
    %v617 = vlaneseq
    %v618 = vshrl.u32 %v617, 7
    %v619 = vsub.s32 1, %v618
    %v620 = vrot.slane %v611, %v619
    %v621 = vlaneseq
    %v622 = vshrl.u32 %v621, 7
    %v623 = vsub.s32 2, %v622
    %v624 = vrot.slane %v611, %v623
    %v1028 = vunpack.c.l.b16 %v211
    %v1029 = vunpack.c.h.b16 %v211
    %v1030 = vunpack.c.l.b16 %v212
    %v1031 = vunpack.c.l.b16 %v213
    %v1032 = vunpack.c.h.b16 %v213
    %v1033 = vunpack.c.l.b16 %v214
    %v1034 = vunpack.c.l.b16 %v215
    %v1035 = vunpack.c.h.b16 %v215
    %v1036 = vunpack.c.l.b16 %v216
    %v1037 = vunpack.c.l.b16 %v217
    %v1038 = vunpack.c.h.b16 %v217
    %v1039 = vunpack.c.l.b16 %v218
    %v1040 = vunpack.c.l.b16 %v219
    %v1041 = vunpack.c.h.b16 %v219
    %v1042 = vunpack.c.l.b16 %v220
    %v1043 = vunpack.c.l.b16 %v221
    %v1044 = vunpack.c.h.b16 %v221
    %v1045 = vunpack.c.l.b16 %v222
    %v1046 = vunpack.c.l.b16 %v223
    %v1047 = vunpack.c.h.b16 %v223
    %v1048 = vunpack.c.l.b16 %v224
    %v1049 = vunpack.c.l.b16 %v225
    %v1050 = vunpack.c.h.b16 %v225
    %v1051 = vunpack.c.l.b16 %v226
    %v1052 = vunpack.c.l.b16 %v227
    %v1053 = vunpack.c.h.b16 %v227
    %v1054 = vunpack.c.l.b16 %v228
    %v1055 = vunpack.c.l.b16 %v229
    %v1056 = vunpack.c.h.b16 %v229
    %v1057 = vunpack.c.l.b16 %v230
    %v1058 = vunpack.c.l.b16 %v231
    %v1059 = vunpack.c.h.b16 %v231
    %v1060 = vunpack.c.l.b16 %v232
    %v1061 = vunpack.c.l.b16 %v233
    %v1062 = vunpack.c.h.b16 %v233
    %v1063 = vunpack.c.l.b16 %v234
    %v1064 = vunpack.c.l.b16 %v235
    %v1065 = vunpack.c.h.b16 %v235
    %v1066 = vunpack.c.l.b16 %v236
    %v1067 = vunpack.c.l.b16 %v237
    %v1068 = vunpack.c.h.b16 %v237
    %v1069 = vunpack.c.l.b16 %v238
    %v1070 = vunpack.c.l.b16 %v239
    %v1071 = vunpack.c.h.b16 %v239
    %v1072 = vunpack.c.l.b16 %v240
    %v1073 = vunpack.c.l.b16 %v241
    %v1074 = vunpack.c.h.b16 %v241
    %v1075 = vunpack.c.l.b16 %v242
    %v1076 = vunpack.c.l.b16 %v243
    %v1077 = vunpack.c.h.b16 %v243
    %v1078 = vunpack.c.l.b16 %v244
    %v1079 = vunpack.c.l.b16 %v245
    %v1080 = vunpack.c.h.b16 %v245
    %v1081 = vunpack.c.l.b16 %v246
    %v1082 = vunpack.c.l.b16 %v247
    %v1083 = vunpack.c.h.b16 %v247
    %v1084 = vunpack.c.l.b16 %v248
    %v1085 = vunpack.c.l.b16 %v249
    %v1086 = vunpack.c.h.b16 %v249
    %v1087 = vunpack.c.l.b16 %v250
    %v1088 = vunpack.c.l.b16 %v251
    %v1089 = vunpack.c.h.b16 %v251
    %v1090 = vunpack.c.l.b16 %v252
    %v1091 = vunpack.c.l.b16 %v253
    %v1092 = vunpack.c.h.b16 %v253
    %v1093 = vunpack.c.l.b16 %v254
    %v1094 = vunpack.c.l.b16 %v255
    %v1095 = vunpack.c.h.b16 %v255
    %v1096 = vunpack.c.l.b16 %v256
    %v1097 = vunpack.c.l.b16 %v257
    %v1098 = vunpack.c.h.b16 %v257
    %v1099 = vunpack.c.l.b16 %v258
    %v1100 = vunpack.c.l.b16 %v259
    %v1101 = vunpack.c.h.b16 %v259
    %v1102 = vunpack.c.l.b16 %v260
    %v1103 = vunpack.c.l.b16 %v261
    %v1104 = vunpack.c.h.b16 %v261
    %v1105 = vunpack.c.l.b16 %v262
    %v1106 = vunpack.c.l.b16 %v263
    %v1107 = vunpack.c.h.b16 %v263
    %v1108 = vunpack.c.l.b16 %v264
    %v1109 = vunpack.c.l.b16 %v265
    %v1110 = vunpack.c.h.b16 %v265
    %v1111 = vunpack.c.l.b16 %v266
    %v1112 = vunpack.c.l.b16 %v267
    %v1113 = vunpack.c.h.b16 %v267
    %v1114 = vunpack.c.l.b16 %v268
    %v1115 = vunpack.c.l.b16 %v269
    %v1116 = vunpack.c.h.b16 %v269
    %v1117 = vunpack.c.l.b16 %v270
    %v1118 = vunpack.c.l.b16 %v271
    %v1119 = vunpack.c.h.b16 %v271
    %v1120 = vunpack.c.l.b16 %v272
    %v1121 = vunpack.c.l.b16 %v273
    %v1122 = vunpack.c.h.b16 %v273
    %v1123 = vunpack.c.l.b16 %v274
    %v1124 = vunpack.c.l.b16 %v275
    %v1125 = vunpack.c.h.b16 %v275
    %v1126 = vunpack.c.l.b16 %v276
    %v1127 = vunpack.c.l.b16 %v277
    %v1128 = vunpack.c.h.b16 %v277
    %v1129 = vunpack.c.l.b16 %v278
    %v1130 = vunpack.c.l.b16 %v279
    %v1131 = vunpack.c.h.b16 %v279
    %v1132 = vunpack.c.l.b16 %v280
    %v1133 = vunpack.c.l.b16 %v281
    %v1134 = vunpack.c.h.b16 %v281
    %v1135 = vunpack.c.l.b16 %v282
    %v1136 = vunpack.c.l.b16 %v283
    %v1137 = vunpack.c.h.b16 %v283
    %v1138 = vunpack.c.l.b16 %v284
    %v1139 = vunpack.c.l.b16 %v285
    %v1140 = vunpack.c.h.b16 %v285
    %v1141 = vunpack.c.l.b16 %v286
    %v1142 = vunpack.c.l.b16 %v287
    %v1143 = vunpack.c.h.b16 %v287
    %v1144 = vunpack.c.l.b16 %v288
    %v1145 = vunpack.c.l.b16 %v289
    %v1146 = vunpack.c.h.b16 %v289
    %v1147 = vunpack.c.l.b16 %v290
    %v1148 = vunpack.c.l.b16 %v291
    %v1149 = vunpack.c.h.b16 %v291
    %v1150 = vunpack.c.l.b16 %v292
    %v1151 = vunpack.c.l.b16 %v293
    %v1152 = vunpack.c.h.b16 %v293
    %v1153 = vunpack.c.l.b16 %v294
    %v1154 = vunpack.c.l.b16 %v295
    %v1155 = vunpack.c.h.b16 %v295
    %v1156 = vunpack.c.l.b16 %v296
    %v1157 = vunpack.c.l.b16 %v297
    %v1158 = vunpack.c.h.b16 %v297
    %v1159 = vunpack.c.l.b16 %v298
    %v1160 = vunpack.c.l.b16 %v299
    %v1161 = vunpack.c.h.b16 %v299
    %v1162 = vunpack.c.l.b16 %v300
    %v1163 = vunpack.c.l.b16 %v301
    %v1164 = vunpack.c.h.b16 %v301
    %v1165 = vunpack.c.l.b16 %v302
    %v1166 = vunpack.c.l.b16 %v303
    %v1167 = vunpack.c.h.b16 %v303
    %v1168 = vunpack.c.l.b16 %v304
    %v1169 = vunpack.c.l.b16 %v305
    %v1170 = vunpack.c.h.b16 %v305
    %v1171 = vunpack.c.l.b16 %v306
    %v1172 = vunpack.c.l.b16 %v307
    %v1173 = vunpack.c.h.b16 %v307
    %v1174 = vunpack.c.l.b16 %v308
    %v1175 = vunpack.c.l.b16 %v309
    %v1176 = vunpack.c.h.b16 %v309
    %v1177 = vunpack.c.l.b16 %v310
    %v1178 = vunpack.c.l.b16 %v311
    %v1179 = vunpack.c.h.b16 %v311
    %v1180 = vunpack.c.l.b16 %v312
    %v1181 = vunpack.c.l.b16 %v313
    %v1182 = vunpack.c.h.b16 %v313
    %v1183 = vunpack.c.l.b16 %v314
    %v1184 = vunpack.c.l.b16 %v315
    %v1185 = vunpack.c.h.b16 %v315
    %v1186 = vunpack.c.l.b16 %v316
    %v1187 = vunpack.c.l.b16 %v317
    %v1188 = vunpack.c.h.b16 %v317
    %v1189 = vunpack.c.l.b16 %v318
    %v1190 = vunpack.c.l.b16 %v319
    %v1191 = vunpack.c.h.b16 %v319
    %v1192 = vunpack.c.l.b16 %v320
    %v1193 = vunpack.c.l.b16 %v321
    %v1194 = vunpack.c.h.b16 %v321
    %v1195 = vunpack.c.l.b16 %v322
    %v1196 = vunpack.c.l.b16 %v323
    %v1197 = vunpack.c.h.b16 %v323
    %v1198 = vunpack.c.l.b16 %v324
    %v1199 = vunpack.c.l.b16 %v325
    %v1200 = vunpack.c.h.b16 %v325
    %v1201 = vunpack.c.l.b16 %v326
    %v1202 = vunpack.c.l.b16 %v327
    %v1203 = vunpack.c.h.b16 %v327
    %v1204 = vunpack.c.l.b16 %v328
    %v1205 = vunpack.c.l.b16 %v329
    %v1206 = vunpack.c.h.b16 %v329
    %v1207 = vunpack.c.l.b16 %v330
    %v1208 = vunpack.c.l.b16 %v331
    %v1209 = vunpack.c.h.b16 %v331
    %v1210 = vunpack.c.l.b16 %v332
    %v1211 = vunpack.c.l.b16 %v333
    %v1212 = vunpack.c.h.b16 %v333
    %v1213 = vunpack.c.l.b16 %v334
    %v1214 = vunpack.c.l.b16 %v335
    %v1215 = vunpack.c.h.b16 %v335
    %v1216 = vunpack.c.l.b16 %v336
    %v1217 = vunpack.c.l.b16 %v337
    %v1218 = vunpack.c.h.b16 %v337
    %v1219 = vunpack.c.l.b16 %v338
    %v1220 = vunpack.c.l.b16 %v339
    %v1221 = vunpack.c.h.b16 %v339
    %v1222 = vunpack.c.l.b16 %v340
    %v1223 = vunpack.c.l.b16 %v341
    %v1224 = vunpack.c.h.b16 %v341
    %v1225 = vunpack.c.l.b16 %v342
    %v1226 = vunpack.c.l.b16 %v343
    %v1227 = vunpack.c.h.b16 %v343
    %v1228 = vunpack.c.l.b16 %v344
    %v1229 = vunpack.c.l.b16 %v345
    %v1230 = vunpack.c.h.b16 %v345
    %v1231 = vunpack.c.l.b16 %v346
    %v1232 = vunpack.c.l.b16 %v347
    %v1233 = vunpack.c.h.b16 %v347
    %v1234 = vunpack.c.l.b16 %v348
    %v1235 = vunpack.c.l.b16 %v349
    %v1236 = vunpack.c.h.b16 %v349
    %v1237 = vunpack.c.l.b16 %v350
    %v1238 = vunpack.c.l.b16 %v351
    %v1239 = vunpack.c.h.b16 %v351
    %v1240 = vunpack.c.l.b16 %v352
    %v1241 = vunpack.c.l.b16 %v353
    %v1242 = vunpack.c.h.b16 %v353
    %v1243 = vunpack.c.l.b16 %v354
    %v1244 = vunpack.c.l.b16 %v355
    %v1245 = vunpack.c.h.b16 %v355
    %v1246 = vunpack.c.l.b16 %v356
    %v1247 = vunpack.c.l.b16 %v357
    %v1248 = vunpack.c.h.b16 %v357
    %v1249 = vunpack.c.l.b16 %v358
    %v1250 = vunpack.c.l.b16 %v359
    %v1251 = vunpack.c.h.b16 %v359
    %v1252 = vunpack.c.l.b16 %v360
    %v1253 = vunpack.c.l.b16 %v361
    %v1254 = vunpack.c.h.b16 %v361
    %v1255 = vunpack.c.l.b16 %v362
    %v1256 = vunpack.c.l.b16 %v363
    %v1257 = vunpack.c.h.b16 %v363
    %v1258 = vunpack.c.l.b16 %v364
    %v1259 = vunpack.c.l.b16 %v365
    %v1260 = vunpack.c.h.b16 %v365
    %v1261 = vunpack.c.l.b16 %v366
    %v1262 = vunpack.c.l.b16 %v367
    %v1263 = vunpack.c.h.b16 %v367
    %v1264 = vunpack.c.l.b16 %v368
    %v1265 = vunpack.c.l.b16 %v369
    %v1266 = vunpack.c.h.b16 %v369
    %v1267 = vunpack.c.l.b16 %v370
    %v1268 = vunpack.c.l.b16 %v371
    %v1269 = vunpack.c.h.b16 %v371
    %v1270 = vunpack.c.l.b16 %v372
    %v1271 = vunpack.c.l.b16 %v373
    %v1272 = vunpack.c.h.b16 %v373
    %v1273 = vunpack.c.l.b16 %v374
    %v1274 = vunpack.c.l.b16 %v375
    %v1275 = vunpack.c.h.b16 %v375
    %v1276 = vunpack.c.l.b16 %v376
    %v1277 = vunpack.c.l.b16 %v377
    %v1278 = vunpack.c.h.b16 %v377
    %v1279 = vunpack.c.l.b16 %v378
    %v1280 = vunpack.c.l.b16 %v379
    %v1281 = vunpack.c.h.b16 %v379
    %v1282 = vunpack.c.l.b16 %v380
    %v1283 = vunpack.c.l.b16 %v381
    %v1284 = vunpack.c.h.b16 %v381
    %v1285 = vunpack.c.l.b16 %v382
    %v1286 = vunpack.c.l.b16 %v383
    %v1287 = vunpack.c.h.b16 %v383
    %v1288 = vunpack.c.l.b16 %v384
    %v1289 = vunpack.c.l.b16 %v385
    %v1290 = vunpack.c.h.b16 %v385
    %v1291 = vunpack.c.l.b16 %v386
    %v1292 = vunpack.c.l.b16 %v387
    %v1293 = vunpack.c.h.b16 %v387
    %v1294 = vunpack.c.l.b16 %v388
    %v1295 = vunpack.c.l.b16 %v389
    %v1296 = vunpack.c.h.b16 %v389
    %v1297 = vunpack.c.l.b16 %v390
    %v1298 = vunpack.c.l.b16 %v391
    %v1299 = vunpack.c.h.b16 %v391
    %v1300 = vunpack.c.l.b16 %v392
    %v1301 = vunpack.c.l.b16 %v393
    %v1302 = vunpack.c.h.b16 %v393
    %v1303 = vunpack.c.l.b16 %v394
    %v1304 = vunpack.c.l.b16 %v395
    %v1305 = vunpack.c.h.b16 %v395
    %v1306 = vunpack.c.l.b16 %v396
    %v1307 = vunpack.c.l.b16 %v397
    %v1308 = vunpack.c.h.b16 %v397
    %v1309 = vunpack.c.l.b16 %v398
    %v1310 = vunpack.c.l.b16 %v399
    %v1311 = vunpack.c.h.b16 %v399
    %v1312 = vunpack.c.l.b16 %v400
    %v1313 = vunpack.c.l.b16 %v401
    %v1314 = vunpack.c.h.b16 %v401
    %v1315 = vunpack.c.l.b16 %v402
    %v1316 = vunpack.c.l.b16 %v403
    %v1317 = vunpack.c.h.b16 %v403
    %v1318 = vunpack.c.l.b16 %v404
    %v1319 = vunpack.c.l.b16 %v405
    %v1320 = vunpack.c.h.b16 %v405
    %v1321 = vunpack.c.l.b16 %v406
    %v1322 = vunpack.c.l.b16 %v407
    %v1323 = vunpack.c.h.b16 %v407
    %v1324 = vunpack.c.l.b16 %v408
    %v1325 = vunpack.c.l.b16 %v409
    %v1326 = vunpack.c.h.b16 %v409
    %v1327 = vunpack.c.l.b16 %v410
    %v1328 = vunpack.c.l.b16 %v411
    %v1329 = vunpack.c.h.b16 %v411
    %v1330 = vunpack.c.l.b16 %v412
    %v1331 = vunpack.c.l.b16 %v413
    %v1332 = vunpack.c.h.b16 %v413
    %v1333 = vunpack.c.l.b16 %v414
    %v1334 = vunpack.c.l.b16 %v415
    %v1335 = vunpack.c.h.b16 %v415
    %v1336 = vunpack.c.l.b16 %v416
    %v1337 = vunpack.c.l.b16 %v417
    %v1338 = vunpack.c.h.b16 %v417
    %v1339 = vunpack.c.l.b16 %v418
    %v1340 = vunpack.c.l.b16 %v419
    %v1341 = vunpack.c.h.b16 %v419
    %v1342 = vunpack.c.l.b16 %v420
    %v1343 = vunpack.c.l.b16 %v421
    %v1344 = vunpack.c.h.b16 %v421
    %v1345 = vunpack.c.l.b16 %v422
    %v1346 = vunpack.c.l.b16 %v423
    %v1347 = vunpack.c.h.b16 %v423
    %v1348 = vunpack.c.l.b16 %v424
    %v1349 = vunpack.c.l.b16 %v425
    %v1350 = vunpack.c.h.b16 %v425
    %v1351 = vunpack.c.l.b16 %v426
    %v1352 = vunpack.c.l.b16 %v427
    %v1353 = vunpack.c.h.b16 %v427
    %v1354 = vunpack.c.l.b16 %v428
    %v1355 = vunpack.c.l.b16 %v429
    %v1356 = vunpack.c.h.b16 %v429
    %v1357 = vunpack.c.l.b16 %v430
    %v1358 = vunpack.c.l.b16 %v431
    %v1359 = vunpack.c.h.b16 %v431
    %v1360 = vunpack.c.l.b16 %v432
    %v1361 = vunpack.c.l.b16 %v433
    %v1362 = vunpack.c.h.b16 %v433
    %v1363 = vunpack.c.l.b16 %v434
    %v1364 = vunpack.c.l.b16 %v435
    %v1365 = vunpack.c.h.b16 %v435
    %v1366 = vunpack.c.l.b16 %v436
    %v1367 = vunpack.c.l.b16 %v437
    %v1368 = vunpack.c.h.b16 %v437
    %v1369 = vunpack.c.l.b16 %v438
    %v1370 = vunpack.c.l.b16 %v439
    %v1371 = vunpack.c.h.b16 %v439
    %v1372 = vunpack.c.l.b16 %v440
    %v1373 = vunpack.c.l.b16 %v441
    %v1374 = vunpack.c.h.b16 %v441
    %v1375 = vunpack.c.l.b16 %v442
    %v1376 = vunpack.c.l.b16 %v443
    %v1377 = vunpack.c.h.b16 %v443
    %v1378 = vunpack.c.l.b16 %v444
    %v1379 = vunpack.c.l.b16 %v445
    %v1380 = vunpack.c.h.b16 %v445
    %v1381 = vunpack.c.l.b16 %v446
    %v1382 = vunpack.c.l.b16 %v447
    %v1383 = vunpack.c.h.b16 %v447
    %v1384 = vunpack.c.l.b16 %v448
    %v1385 = vunpack.c.l.b16 %v449
    %v1386 = vunpack.c.h.b16 %v449
    %v1387 = vunpack.c.l.b16 %v450
    %v1388 = vunpack.c.l.b16 %v451
    %v1389 = vunpack.c.h.b16 %v451
    %v1390 = vunpack.c.l.b16 %v452
    %v1391 = vunpack.c.l.b16 %v453
    %v1392 = vunpack.c.h.b16 %v453
    %v1393 = vunpack.c.l.b16 %v454
    %v1394 = vunpack.c.l.b16 %v455
    %v1395 = vunpack.c.h.b16 %v455
    %v1396 = vunpack.c.l.b16 %v456
    %v1397 = vunpack.c.l.b16 %v457
    %v1398 = vunpack.c.h.b16 %v457
    %v1399 = vunpack.c.l.b16 %v458
    %v1400 = vunpack.c.l.b16 %v459
    %v1401 = vunpack.c.h.b16 %v459
    %v1402 = vunpack.c.l.b16 %v460
    %v1403 = vunpack.c.l.b16 %v461
    %v1404 = vunpack.c.h.b16 %v461
    %v1405 = vunpack.c.l.b16 %v462
    %v1406 = vunpack.c.l.b16 %v463
    %v1407 = vunpack.c.h.b16 %v463
    %v1408 = vunpack.c.l.b16 %v464
    %v1409 = vunpack.c.l.b16 %v465
    %v1410 = vunpack.c.h.b16 %v465
    %v1411 = vunpack.c.l.b16 %v466
    %v1412 = vunpack.c.l.b16 %v467
    %v1413 = vunpack.c.h.b16 %v467
    %v1414 = vunpack.c.l.b16 %v468
    %v1415 = vunpack.c.l.b16 %v469
    %v1416 = vunpack.c.h.b16 %v469
    %v1417 = vunpack.c.l.b16 %v470
    %v1418 = vunpack.c.l.b16 %v471
    %v1419 = vunpack.c.h.b16 %v471
    %v1420 = vunpack.c.l.b16 %v472
    %v1421 = vunpack.c.l.b16 %v473
    %v1422 = vunpack.c.h.b16 %v473
    %v1423 = vunpack.c.l.b16 %v474
    %v1424 = vunpack.c.l.b16 %v475
    %v1425 = vunpack.c.h.b16 %v475
    %v1426 = vunpack.c.l.b16 %v476
    %v1427 = vunpack.c.l.b16 %v477
    %v1428 = vunpack.c.h.b16 %v477
    %v1429 = vunpack.c.l.b16 %v478
    %v1430 = vunpack.c.l.b16 %v479
    %v1431 = vunpack.c.h.b16 %v479
    %v1432 = vunpack.c.l.b16 %v480
    %v1433 = vunpack.c.l.b16 %v481
    %v1434 = vunpack.c.h.b16 %v481
    %v1435 = vunpack.c.l.b16 %v482
    %v1436 = vunpack.c.l.b16 %v483
    %v1437 = vunpack.c.h.b16 %v483
    %v1438 = vunpack.c.l.b16 %v484
    %v1439 = vunpack.c.l.b16 %v485
    %v1440 = vunpack.c.h.b16 %v485
    %v1441 = vunpack.c.l.b16 %v486
    %v1442 = vunpack.c.l.b16 %v487
    %v1443 = vunpack.c.h.b16 %v487
    %v1444 = vunpack.c.l.b16 %v488
    %v1445 = vunpack.c.l.b16 %v489
    %v1446 = vunpack.c.h.b16 %v489
    %v1447 = vunpack.c.l.b16 %v490
    %v1448 = vunpack.c.l.b16 %v491
    %v1449 = vunpack.c.h.b16 %v491
    %v1450 = vunpack.c.l.b16 %v492
    %v1451 = vunpack.c.l.b16 %v493
    %v1452 = vunpack.c.h.b16 %v493
    %v1453 = vunpack.c.l.b16 %v494
    %v1454 = vunpack.c.l.b16 %v495
    %v1455 = vunpack.c.h.b16 %v495
    %v1456 = vunpack.c.l.b16 %v496
    %v1457 = vunpack.c.l.b16 %v497
    %v1458 = vunpack.c.h.b16 %v497
    %v1459 = vunpack.c.l.b16 %v498
    %v1460 = vunpack.c.l.b16 %v499
    %v1461 = vunpack.c.h.b16 %v499
    %v1462 = vunpack.c.l.b16 %v500
    %v1463 = vunpack.c.l.b16 %v501
    %v1464 = vunpack.c.h.b16 %v501
    %v1465 = vunpack.c.l.b16 %v502
    %v1466 = vunpack.c.l.b16 %v503
    %v1467 = vunpack.c.h.b16 %v503
    %v1468 = vunpack.c.l.b16 %v504
    %v1469 = vunpack.c.l.b16 %v505
    %v1470 = vunpack.c.h.b16 %v505
    %v1471 = vunpack.c.l.b16 %v506
    %v1472 = vunpack.c.l.b16 %v507
    %v1473 = vunpack.c.h.b16 %v507
    %v1474 = vunpack.c.l.b16 %v508
    %v1475 = vunpack.c.l.b16 %v509
    %v1476 = vunpack.c.h.b16 %v509
    %v1477 = vunpack.c.l.b16 %v510
    %v1478 = vunpack.c.l.b16 %v511
    %v1479 = vunpack.c.h.b16 %v511
    %v1480 = vunpack.c.l.b16 %v512
    %v1481 = vunpack.c.l.b16 %v513
    %v1482 = vunpack.c.h.b16 %v513
    %v1483 = vunpack.c.l.b16 %v514
    %v1484 = vunpack.c.l.b16 %v515
    %v1485 = vunpack.c.h.b16 %v515
    %v1486 = vunpack.c.l.b16 %v516
    %v1487 = vunpack.c.l.b16 %v517
    %v1488 = vunpack.c.h.b16 %v517
    %v1489 = vunpack.c.l.b16 %v518
    %v1490 = vunpack.c.l.b16 %v519
    %v1491 = vunpack.c.h.b16 %v519
    %v1492 = vunpack.c.l.b16 %v520
    %v1493 = vunpack.c.l.b16 %v521
    %v1494 = vunpack.c.h.b16 %v521
    %v1495 = vunpack.c.l.b16 %v522
    %v1496 = vunpack.c.l.b16 %v523
    %v1497 = vunpack.c.h.b16 %v523
    %v1498 = vunpack.c.l.b16 %v524
    %v1499 = vunpack.c.l.b16 %v525
    %v1500 = vunpack.c.h.b16 %v525
    %v1501 = vunpack.c.l.b16 %v526
    %v1502 = vunpack.c.l.b16 %v527
    %v1503 = vunpack.c.h.b16 %v527
    %v1504 = vunpack.c.l.b16 %v528
    %v1505 = vunpack.c.l.b16 %v529
    %v1506 = vunpack.c.h.b16 %v529
    %v1507 = vunpack.c.l.b16 %v530
    %v1508 = vunpack.c.l.b16 %v531
    %v1509 = vunpack.c.h.b16 %v531
    %v1510 = vunpack.c.l.b16 %v532
    %v1511 = vunpack.c.l.b16 %v533
    %v1512 = vunpack.c.h.b16 %v533
    %v1513 = vunpack.c.l.b16 %v534
    %v1514 = vunpack.c.l.b16 %v535
    %v1515 = vunpack.c.h.b16 %v535
    %v1516 = vunpack.c.l.b16 %v536
    %v1517 = vunpack.c.l.b16 %v537
    %v1518 = vunpack.c.h.b16 %v537
    %v1519 = vunpack.c.l.b16 %v538
    %v1520 = vunpack.c.l.b16 %v539
    %v1521 = vunpack.c.h.b16 %v539
    %v1522 = vunpack.c.l.b16 %v540
    %v1523 = vunpack.c.l.b16 %v541
    %v1524 = vunpack.c.h.b16 %v541
    %v1525 = vunpack.c.l.b16 %v542
    %v1526 = vunpack.c.l.b16 %v543
    %v1527 = vunpack.c.h.b16 %v543
    %v1528 = vunpack.c.l.b16 %v544
    %v1529 = vunpack.c.l.b16 %v545
    %v1530 = vunpack.c.h.b16 %v545
    %v1531 = vunpack.c.l.b16 %v546
    %v1532 = vunpack.c.l.b16 %v547
    %v1533 = vunpack.c.h.b16 %v547
    %v1534 = vunpack.c.l.b16 %v548
    %v1535 = vunpack.c.l.b16 %v549
    %v1536 = vunpack.c.h.b16 %v549
    %v1537 = vunpack.c.l.b16 %v550
    %v1538 = vunpack.c.l.b16 %v551
    %v1539 = vunpack.c.h.b16 %v551
    %v1540 = vunpack.c.l.b16 %v552
    %v1541 = vunpack.c.l.b16 %v553
    %v1542 = vunpack.c.h.b16 %v553
    %v1543 = vunpack.c.l.b16 %v554
    %v1544 = vunpack.c.l.b16 %v555
    %v1545 = vunpack.c.h.b16 %v555
    %v1546 = vunpack.c.l.b16 %v556
    %v1547 = vunpack.c.l.b16 %v557
    %v1548 = vunpack.c.h.b16 %v557
    %v1549 = vunpack.c.l.b16 %v558
    %v1550 = vunpack.c.l.b16 %v559
    %v1551 = vunpack.c.h.b16 %v559
    %v1552 = vunpack.c.l.b16 %v560
    %v1553 = vunpack.c.l.b16 %v561
    %v1554 = vunpack.c.h.b16 %v561
    %v1555 = vunpack.c.l.b16 %v562
    %v1556 = vunpack.c.l.b16 %v563
    %v1557 = vunpack.c.h.b16 %v563
    %v1558 = vunpack.c.l.b16 %v564
    %v1559 = vunpack.c.l.b16 %v565
    %v1560 = vunpack.c.h.b16 %v565
    %v1561 = vunpack.c.l.b16 %v566
    %v1562 = vunpack.c.l.b16 %v567
    %v1563 = vunpack.c.h.b16 %v567
    %v1564 = vunpack.c.l.b16 %v568
    %v1565 = vunpack.c.l.b16 %v569
    %v1566 = vunpack.c.h.b16 %v569
    %v1567 = vunpack.c.l.b16 %v570
    %v1568 = vunpack.c.l.b16 %v571
    %v1569 = vunpack.c.h.b16 %v571
    %v1570 = vunpack.c.l.b16 %v572
    %v1571 = vunpack.c.l.b16 %v573
    %v1572 = vunpack.c.h.b16 %v573
    %v1573 = vunpack.c.l.b16 %v574
    %v1574 = vunpack.c.l.b16 %v575
    %v1575 = vunpack.c.h.b16 %v575
    %v1576 = vunpack.c.l.b16 %v576
    %v1577 = vunpack.c.l.b16 %v577
    %v1578 = vunpack.c.h.b16 %v577
    %v1579 = vunpack.c.l.b16 %v578
    %v1580 = vunpack.c.l.b16 %v579
    %v1581 = vunpack.c.h.b16 %v579
    %v1582 = vunpack.c.l.b16 %v580
    %v1583 = vunpack.c.l.b16 %v581
    %v1584 = vunpack.c.h.b16 %v581
    %v1585 = vunpack.c.l.b16 %v582
    %v1586 = vunpack.c.l.b16 %v583
    %v1587 = vunpack.c.h.b16 %v583
    %v1588 = vunpack.c.l.b16 %v584
    %v1589 = vunpack.c.l.b16 %v585
    %v1590 = vunpack.c.h.b16 %v585
    %v1591 = vunpack.c.l.b16 %v586
    %v1592 = vunpack.c.l.b16 %v587
    %v1593 = vunpack.c.h.b16 %v587
    %v1594 = vunpack.c.l.b16 %v588
    %v1595 = vunpack.c.l.b16 %v589
    %v1596 = vunpack.c.h.b16 %v589
    %v1597 = vunpack.c.l.b16 %v590
    %v1598 = vunpack.c.l.b16 %v591
    %v1599 = vunpack.c.h.b16 %v591
    %v1600 = vunpack.c.l.b16 %v592
    %v1601 = vunpack.c.l.b16 %v593
    %v1602 = vunpack.c.h.b16 %v593
    %v1603 = vunpack.c.l.b16 %v594
    %v1604 = vunpack.c.l.b16 %v595
    %v1605 = vunpack.c.h.b16 %v595
    %v1606 = vunpack.c.l.b16 %v596
    %v1607 = vunpack.c.l.b16 %v597
    %v1608 = vunpack.c.h.b16 %v597
    %v1609 = vunpack.c.l.b16 %v598
    %v1610 = vunpack.c.l.b16 %v599
    %v1611 = vunpack.c.h.b16 %v599
    %v1612 = vunpack.c.l.b16 %v600
    %v1613 = vunpack.c.l.b16 %v601
    %v1614 = vunpack.c.h.b16 %v601
    %v1615 = vunpack.c.l.b16 %v602
    %v1616 = vunpack.c.l.b16 %v603
    %v1617 = vunpack.c.h.b16 %v603
    %v1618 = vunpack.c.l.b16 %v604
    %v1619 = vunpack.c.l.b16 %v605
    %v1620 = vunpack.c.h.b16 %v605
    %v1621 = vunpack.c.l.b16 %v606
    %v1622 = vunpack.c.l.b16 %v607
    %v1623 = vunpack.c.h.b16 %v607
    %v1624 = vunpack.c.l.b16 %v608
    %v1625 = vunpack.c.l.b16 %v609
    %v1626 = vunpack.c.h.b16 %v609
    %v1627 = vunpack.c.l.b16 %v610
    %v1628 = vpack.c.b16 %v1031, %v1028
    %v1629 = vpack.c.b16 %v1032, %v1029
    %v1630 = vpack.c.b16 %v1033, %v1030
    %v1631 = vpack.c.b16 %v1037, %v1034
    %v1632 = vpack.c.b16 %v1038, %v1035
    %v1633 = vpack.c.b16 %v1039, %v1036
    %v1634 = vpack.c.b16 %v1043, %v1040
    %v1635 = vpack.c.b16 %v1044, %v1041
    %v1636 = vpack.c.b16 %v1045, %v1042
    %v1637 = vpack.c.b16 %v1049, %v1046
    %v1638 = vpack.c.b16 %v1050, %v1047
    %v1639 = vpack.c.b16 %v1051, %v1048
    %v1640 = vpack.c.b16 %v1055, %v1052
    %v1641 = vpack.c.b16 %v1056, %v1053
    %v1642 = vpack.c.b16 %v1057, %v1054
    %v1643 = vpack.c.b16 %v1061, %v1058
    %v1644 = vpack.c.b16 %v1062, %v1059
    %v1645 = vpack.c.b16 %v1063, %v1060
    %v1646 = vpack.c.b16 %v1067, %v1064
    %v1647 = vpack.c.b16 %v1068, %v1065
    %v1648 = vpack.c.b16 %v1069, %v1066
    %v1649 = vpack.c.b16 %v1073, %v1070
    %v1650 = vpack.c.b16 %v1074, %v1071
    %v1651 = vpack.c.b16 %v1075, %v1072
    %v1652 = vpack.c.b16 %v1079, %v1076
    %v1653 = vpack.c.b16 %v1080, %v1077
    %v1654 = vpack.c.b16 %v1081, %v1078
    %v1655 = vpack.c.b16 %v1085, %v1082
    %v1656 = vpack.c.b16 %v1086, %v1083
    %v1657 = vpack.c.b16 %v1087, %v1084
    %v1658 = vpack.c.b16 %v1091, %v1088
    %v1659 = vpack.c.b16 %v1092, %v1089
    %v1660 = vpack.c.b16 %v1093, %v1090
    %v1661 = vpack.c.b16 %v1097, %v1094
    %v1662 = vpack.c.b16 %v1098, %v1095
    %v1663 = vpack.c.b16 %v1099, %v1096
    %v1664 = vpack.c.b16 %v1103, %v1100
    %v1665 = vpack.c.b16 %v1104, %v1101
    %v1666 = vpack.c.b16 %v1105, %v1102
    %v1667 = vpack.c.b16 %v1109, %v1106
    %v1668 = vpack.c.b16 %v1110, %v1107
    %v1669 = vpack.c.b16 %v1111, %v1108
    %v1670 = vpack.c.b16 %v1115, %v1112
    %v1671 = vpack.c.b16 %v1116, %v1113
    %v1672 = vpack.c.b16 %v1117, %v1114
    %v1673 = vpack.c.b16 %v1121, %v1118
    %v1674 = vpack.c.b16 %v1122, %v1119
    %v1675 = vpack.c.b16 %v1123, %v1120
    %v1676 = vpack.c.b16 %v1127, %v1124
    %v1677 = vpack.c.b16 %v1128, %v1125
    %v1678 = vpack.c.b16 %v1129, %v1126
    %v1679 = vpack.c.b16 %v1133, %v1130
    %v1680 = vpack.c.b16 %v1134, %v1131
    %v1681 = vpack.c.b16 %v1135, %v1132
    %v1682 = vpack.c.b16 %v1139, %v1136
    %v1683 = vpack.c.b16 %v1140, %v1137
    %v1684 = vpack.c.b16 %v1141, %v1138
    %v1685 = vpack.c.b16 %v1145, %v1142
    %v1686 = vpack.c.b16 %v1146, %v1143
    %v1687 = vpack.c.b16 %v1147, %v1144
    %v1688 = vpack.c.b16 %v1151, %v1148
    %v1689 = vpack.c.b16 %v1152, %v1149
    %v1690 = vpack.c.b16 %v1153, %v1150
    %v1691 = vpack.c.b16 %v1157, %v1154
    %v1692 = vpack.c.b16 %v1158, %v1155
    %v1693 = vpack.c.b16 %v1159, %v1156
    %v1694 = vpack.c.b16 %v1163, %v1160
    %v1695 = vpack.c.b16 %v1164, %v1161
    %v1696 = vpack.c.b16 %v1165, %v1162
    %v1697 = vpack.c.b16 %v1169, %v1166
    %v1698 = vpack.c.b16 %v1170, %v1167
    %v1699 = vpack.c.b16 %v1171, %v1168
    %v1700 = vpack.c.b16 %v1175, %v1172
    %v1701 = vpack.c.b16 %v1176, %v1173
    %v1702 = vpack.c.b16 %v1177, %v1174
    %v1703 = vpack.c.b16 %v1181, %v1178
    %v1704 = vpack.c.b16 %v1182, %v1179
    %v1705 = vpack.c.b16 %v1183, %v1180
    %v1706 = vpack.c.b16 %v1187, %v1184
    %v1707 = vpack.c.b16 %v1188, %v1185
    %v1708 = vpack.c.b16 %v1189, %v1186
    %v1709 = vpack.c.b16 %v1193, %v1190
    %v1710 = vpack.c.b16 %v1194, %v1191
    %v1711 = vpack.c.b16 %v1195, %v1192
    %v1712 = vpack.c.b16 %v1199, %v1196
    %v1713 = vpack.c.b16 %v1200, %v1197
    %v1714 = vpack.c.b16 %v1201, %v1198
    %v1715 = vpack.c.b16 %v1205, %v1202
    %v1716 = vpack.c.b16 %v1206, %v1203
    %v1717 = vpack.c.b16 %v1207, %v1204
    %v1718 = vpack.c.b16 %v1211, %v1208
    %v1719 = vpack.c.b16 %v1212, %v1209
    %v1720 = vpack.c.b16 %v1213, %v1210
    %v1721 = vpack.c.b16 %v1217, %v1214
    %v1722 = vpack.c.b16 %v1218, %v1215
    %v1723 = vpack.c.b16 %v1219, %v1216
    %v1724 = vpack.c.b16 %v1223, %v1220
    %v1725 = vpack.c.b16 %v1224, %v1221
    %v1726 = vpack.c.b16 %v1225, %v1222
    %v1727 = vpack.c.b16 %v1229, %v1226
    %v1728 = vpack.c.b16 %v1230, %v1227
    %v1729 = vpack.c.b16 %v1231, %v1228
    %v1730 = vpack.c.b16 %v1235, %v1232
    %v1731 = vpack.c.b16 %v1236, %v1233
    %v1732 = vpack.c.b16 %v1237, %v1234
    %v1733 = vpack.c.b16 %v1241, %v1238
    %v1734 = vpack.c.b16 %v1242, %v1239
    %v1735 = vpack.c.b16 %v1243, %v1240
    %v1736 = vpack.c.b16 %v1247, %v1244
    %v1737 = vpack.c.b16 %v1248, %v1245
    %v1738 = vpack.c.b16 %v1249, %v1246
    %v1739 = vpack.c.b16 %v1253, %v1250
    %v1740 = vpack.c.b16 %v1254, %v1251
    %v1741 = vpack.c.b16 %v1255, %v1252
    %v1742 = vpack.c.b16 %v1259, %v1256
    %v1743 = vpack.c.b16 %v1260, %v1257
    %v1744 = vpack.c.b16 %v1261, %v1258
    %v1745 = vpack.c.b16 %v1265, %v1262
    %v1746 = vpack.c.b16 %v1266, %v1263
    %v1747 = vpack.c.b16 %v1267, %v1264
    %v1748 = vpack.c.b16 %v1271, %v1268
    %v1749 = vpack.c.b16 %v1272, %v1269
    %v1750 = vpack.c.b16 %v1273, %v1270
    %v1751 = vpack.c.b16 %v1277, %v1274
    %v1752 = vpack.c.b16 %v1278, %v1275
    %v1753 = vpack.c.b16 %v1279, %v1276
    %v1754 = vpack.c.b16 %v1283, %v1280
    %v1755 = vpack.c.b16 %v1284, %v1281
    %v1756 = vpack.c.b16 %v1285, %v1282
    %v1757 = vpack.c.b16 %v1289, %v1286
    %v1758 = vpack.c.b16 %v1290, %v1287
    %v1759 = vpack.c.b16 %v1291, %v1288
    %v1760 = vpack.c.b16 %v1295, %v1292
    %v1761 = vpack.c.b16 %v1296, %v1293
    %v1762 = vpack.c.b16 %v1297, %v1294
    %v1763 = vpack.c.b16 %v1301, %v1298
    %v1764 = vpack.c.b16 %v1302, %v1299
    %v1765 = vpack.c.b16 %v1303, %v1300
    %v1766 = vpack.c.b16 %v1307, %v1304
    %v1767 = vpack.c.b16 %v1308, %v1305
    %v1768 = vpack.c.b16 %v1309, %v1306
    %v1769 = vpack.c.b16 %v1313, %v1310
    %v1770 = vpack.c.b16 %v1314, %v1311
    %v1771 = vpack.c.b16 %v1315, %v1312
    %v1772 = vpack.c.b16 %v1319, %v1316
    %v1773 = vpack.c.b16 %v1320, %v1317
    %v1774 = vpack.c.b16 %v1321, %v1318
    %v1775 = vpack.c.b16 %v1325, %v1322
    %v1776 = vpack.c.b16 %v1326, %v1323
    %v1777 = vpack.c.b16 %v1327, %v1324
    %v1778 = vpack.c.b16 %v1331, %v1328
    %v1779 = vpack.c.b16 %v1332, %v1329
    %v1780 = vpack.c.b16 %v1333, %v1330
    %v1781 = vpack.c.b16 %v1337, %v1334
    %v1782 = vpack.c.b16 %v1338, %v1335
    %v1783 = vpack.c.b16 %v1339, %v1336
    %v1784 = vpack.c.b16 %v1343, %v1340
    %v1785 = vpack.c.b16 %v1344, %v1341
    %v1786 = vpack.c.b16 %v1345, %v1342
    %v1787 = vpack.c.b16 %v1349, %v1346
    %v1788 = vpack.c.b16 %v1350, %v1347
    %v1789 = vpack.c.b16 %v1351, %v1348
    %v1790 = vpack.c.b16 %v1355, %v1352
    %v1791 = vpack.c.b16 %v1356, %v1353
    %v1792 = vpack.c.b16 %v1357, %v1354
    %v1793 = vpack.c.b16 %v1361, %v1358
    %v1794 = vpack.c.b16 %v1362, %v1359
    %v1795 = vpack.c.b16 %v1363, %v1360
    %v1796 = vpack.c.b16 %v1367, %v1364
    %v1797 = vpack.c.b16 %v1368, %v1365
    %v1798 = vpack.c.b16 %v1369, %v1366
    %v1799 = vpack.c.b16 %v1373, %v1370
    %v1800 = vpack.c.b16 %v1374, %v1371
    %v1801 = vpack.c.b16 %v1375, %v1372
    %v1802 = vpack.c.b16 %v1379, %v1376
    %v1803 = vpack.c.b16 %v1380, %v1377
    %v1804 = vpack.c.b16 %v1381, %v1378
    %v1805 = vpack.c.b16 %v1385, %v1382
    %v1806 = vpack.c.b16 %v1386, %v1383
    %v1807 = vpack.c.b16 %v1387, %v1384
    %v1808 = vpack.c.b16 %v1391, %v1388
    %v1809 = vpack.c.b16 %v1392, %v1389
    %v1810 = vpack.c.b16 %v1393, %v1390
    %v1811 = vpack.c.b16 %v1397, %v1394
    %v1812 = vpack.c.b16 %v1398, %v1395
    %v1813 = vpack.c.b16 %v1399, %v1396
    %v1814 = vpack.c.b16 %v1403, %v1400
    %v1815 = vpack.c.b16 %v1404, %v1401
    %v1816 = vpack.c.b16 %v1405, %v1402
    %v1817 = vpack.c.b16 %v1409, %v1406
    %v1818 = vpack.c.b16 %v1410, %v1407
    %v1819 = vpack.c.b16 %v1411, %v1408
    %v1820 = vpack.c.b16 %v1415, %v1412
    %v1821 = vpack.c.b16 %v1416, %v1413
    %v1822 = vpack.c.b16 %v1417, %v1414
    %v1823 = vpack.c.b16 %v1421, %v1418
    %v1824 = vpack.c.b16 %v1422, %v1419
    %v1825 = vpack.c.b16 %v1423, %v1420
    %v1826 = vpack.c.b16 %v1427, %v1424
    %v1827 = vpack.c.b16 %v1428, %v1425
    %v1828 = vpack.c.b16 %v1429, %v1426
    %v1829 = vpack.c.b16 %v1433, %v1430
    %v1830 = vpack.c.b16 %v1434, %v1431
    %v1831 = vpack.c.b16 %v1435, %v1432
    %v1832 = vpack.c.b16 %v1439, %v1436
    %v1833 = vpack.c.b16 %v1440, %v1437
    %v1834 = vpack.c.b16 %v1441, %v1438
    %v1835 = vpack.c.b16 %v1445, %v1442
    %v1836 = vpack.c.b16 %v1446, %v1443
    %v1837 = vpack.c.b16 %v1447, %v1444
    %v1838 = vpack.c.b16 %v1451, %v1448
    %v1839 = vpack.c.b16 %v1452, %v1449
    %v1840 = vpack.c.b16 %v1453, %v1450
    %v1841 = vpack.c.b16 %v1457, %v1454
    %v1842 = vpack.c.b16 %v1458, %v1455
    %v1843 = vpack.c.b16 %v1459, %v1456
    %v1844 = vpack.c.b16 %v1463, %v1460
    %v1845 = vpack.c.b16 %v1464, %v1461
    %v1846 = vpack.c.b16 %v1465, %v1462
    %v1847 = vpack.c.b16 %v1469, %v1466
    %v1848 = vpack.c.b16 %v1470, %v1467
    %v1849 = vpack.c.b16 %v1471, %v1468
    %v1850 = vpack.c.b16 %v1475, %v1472
    %v1851 = vpack.c.b16 %v1476, %v1473
    %v1852 = vpack.c.b16 %v1477, %v1474
    %v1853 = vpack.c.b16 %v1481, %v1478
    %v1854 = vpack.c.b16 %v1482, %v1479
    %v1855 = vpack.c.b16 %v1483, %v1480
    %v1856 = vpack.c.b16 %v1487, %v1484
    %v1857 = vpack.c.b16 %v1488, %v1485
    %v1858 = vpack.c.b16 %v1489, %v1486
    %v1859 = vpack.c.b16 %v1493, %v1490
    %v1860 = vpack.c.b16 %v1494, %v1491
    %v1861 = vpack.c.b16 %v1495, %v1492
    %v1862 = vpack.c.b16 %v1499, %v1496
    %v1863 = vpack.c.b16 %v1500, %v1497
    %v1864 = vpack.c.b16 %v1501, %v1498
    %v1865 = vpack.c.b16 %v1505, %v1502
    %v1866 = vpack.c.b16 %v1506, %v1503
    %v1867 = vpack.c.b16 %v1507, %v1504
    %v1868 = vpack.c.b16 %v1511, %v1508
    %v1869 = vpack.c.b16 %v1512, %v1509
    %v1870 = vpack.c.b16 %v1513, %v1510
    %v1871 = vpack.c.b16 %v1517, %v1514
    %v1872 = vpack.c.b16 %v1518, %v1515
    %v1873 = vpack.c.b16 %v1519, %v1516
    %v1874 = vpack.c.b16 %v1523, %v1520
    %v1875 = vpack.c.b16 %v1524, %v1521
    %v1876 = vpack.c.b16 %v1525, %v1522
    %v1877 = vpack.c.b16 %v1529, %v1526
    %v1878 = vpack.c.b16 %v1530, %v1527
    %v1879 = vpack.c.b16 %v1531, %v1528
    %v1880 = vpack.c.b16 %v1535, %v1532
    %v1881 = vpack.c.b16 %v1536, %v1533
    %v1882 = vpack.c.b16 %v1537, %v1534
    %v1883 = vpack.c.b16 %v1541, %v1538
    %v1884 = vpack.c.b16 %v1542, %v1539
    %v1885 = vpack.c.b16 %v1543, %v1540
    %v1886 = vpack.c.b16 %v1547, %v1544
    %v1887 = vpack.c.b16 %v1548, %v1545
    %v1888 = vpack.c.b16 %v1549, %v1546
    %v1889 = vpack.c.b16 %v1553, %v1550
    %v1890 = vpack.c.b16 %v1554, %v1551
    %v1891 = vpack.c.b16 %v1555, %v1552
    %v1892 = vpack.c.b16 %v1559, %v1556
    %v1893 = vpack.c.b16 %v1560, %v1557
    %v1894 = vpack.c.b16 %v1561, %v1558
    %v1895 = vpack.c.b16 %v1565, %v1562
    %v1896 = vpack.c.b16 %v1566, %v1563
    %v1897 = vpack.c.b16 %v1567, %v1564
    %v1898 = vpack.c.b16 %v1571, %v1568
    %v1899 = vpack.c.b16 %v1572, %v1569
    %v1900 = vpack.c.b16 %v1573, %v1570
    %v1901 = vpack.c.b16 %v1577, %v1574
    %v1902 = vpack.c.b16 %v1578, %v1575
    %v1903 = vpack.c.b16 %v1579, %v1576
    %v1904 = vpack.c.b16 %v1583, %v1580
    %v1905 = vpack.c.b16 %v1584, %v1581
    %v1906 = vpack.c.b16 %v1585, %v1582
    %v1907 = vpack.c.b16 %v1589, %v1586
    %v1908 = vpack.c.b16 %v1590, %v1587
    %v1909 = vpack.c.b16 %v1591, %v1588
    %v1910 = vpack.c.b16 %v1595, %v1592
    %v1911 = vpack.c.b16 %v1596, %v1593
    %v1912 = vpack.c.b16 %v1597, %v1594
    %v1913 = vpack.c.b16 %v1601, %v1598
    %v1914 = vpack.c.b16 %v1602, %v1599
    %v1915 = vpack.c.b16 %v1603, %v1600
    %v1916 = vpack.c.b16 %v1607, %v1604
    %v1917 = vpack.c.b16 %v1608, %v1605
    %v1918 = vpack.c.b16 %v1609, %v1606
    %v1919 = vpack.c.b16 %v1613, %v1610
    %v1920 = vpack.c.b16 %v1614, %v1611
    %v1921 = vpack.c.b16 %v1615, %v1612
    %v1922 = vpack.c.b16 %v1619, %v1616
    %v1923 = vpack.c.b16 %v1620, %v1617
    %v1924 = vpack.c.b16 %v1621, %v1618
    %v1925 = vpack.c.b16 %v1625, %v1622
    %v1926 = vpack.c.b16 %v1626, %v1623
    %v1927 = vpack.c.b16 %v1627, %v1624
    %vm2228 = vcmask 523264
    %v2230 = vsel %vm2228, %v210, 0
    %2232 = vmatprep.subr.bf16.mxu0 %v1629
    %2233 = vmatpush1.bf16.msra.mxu0 %v1628
    %2234 = vmatprep.subr.bf16.mxu0 %v1632
    %2235 = vmatpush1.bf16.msra.mxu0 %v1631
    %2236 = vmatprep.subr.bf16.mxu0 %v1635
    %2237 = vmatpush1.bf16.msra.mxu0 %v1634
    %2238 = vmatprep.subr.bf16.mxu0 %v1638
    %2239 = vmatpush1.bf16.msra.mxu0 %v1637
    %2240 = vmatprep.subr.bf16.mxu0 %v1641
    %2241 = vmatpush1.bf16.msra.mxu0 %v1640
    %2242 = vmatprep.subr.bf16.mxu0 %v1644
    %2243 = vmatpush1.bf16.msra.mxu0 %v1643
    %2244 = vmatprep.subr.bf16.mxu0 %v1647
    %2245 = vmatpush1.bf16.msra.mxu0 %v1646
    %2246 = vmatprep.subr.bf16.mxu0 %v1650
    %2247 = vmatpush1.bf16.msra.mxu0 %v1649
    %2248 = vmatprep.subr.bf16.mxu0 %v1653
    %2249 = vmatpush1.bf16.msra.mxu0 %v1652
    %2250 = vmatprep.subr.bf16.mxu0 %v1656
    %2251 = vmatpush1.bf16.msra.mxu0 %v1655
    %2252 = vmatprep.subr.bf16.mxu0 %v1659
    %2253 = vmatpush1.bf16.msra.mxu0 %v1658
    %2254 = vmatprep.subr.bf16.mxu0 %v1662
    %2255 = vmatpush1.bf16.msra.mxu0 %v1661
    %2256 = vmatprep.subr.bf16.mxu0 %v1665
    %2257 = vmatpush1.bf16.msra.mxu0 %v1664
    %2258 = vmatprep.subr.bf16.mxu0 %v1668
    %2259 = vmatpush1.bf16.msra.mxu0 %v1667
    %2260 = vmatprep.subr.bf16.mxu0 %v1671
    %2261 = vmatpush1.bf16.msra.mxu0 %v1670
    %2262 = vmatprep.subr.bf16.mxu0 %v1674
    %2263 = vmatpush1.bf16.msra.mxu0 %v1673
    %2264 = vmatprep.mubr.bf16.mxu0 %v199
    %2265 = vmatmul.mubr.bf16.gmra.mrb[0].mxu0 %v198
    %v2266 = vpop.f32.mrb[0].mxu0
    %v2267 = vadd.f32 %v616, %v2266
    %v2268 = vpop.f32.mrb[0].mxu0
    %v2269 = vadd.f32 %v620, %v2268
    %v2270 = vpop.f32.mrb[0].mxu0
    %v2271 = vpop.f32.mrb[0].mxu0
    %2272 = vdwg.mxu0
    %2273 = vmatprep.subr.bf16.mxu0 %v1677
    %2274 = vmatpush1.bf16.msra.mxu0 %v1676
    %2275 = vmatprep.subr.bf16.mxu0 %v1680
    %2276 = vmatpush1.bf16.msra.mxu0 %v1679
    %2277 = vmatprep.subr.bf16.mxu0 %v1683
    %2278 = vmatpush1.bf16.msra.mxu0 %v1682
    %2279 = vmatprep.subr.bf16.mxu0 %v1686
    %2280 = vmatpush1.bf16.msra.mxu0 %v1685
    %2281 = vmatprep.subr.bf16.mxu0 %v1689
    %2282 = vmatpush1.bf16.msra.mxu0 %v1688
    %2283 = vmatprep.subr.bf16.mxu0 %v1692
    %2284 = vmatpush1.bf16.msra.mxu0 %v1691
    %2285 = vmatprep.subr.bf16.mxu0 %v1695
    %2286 = vmatpush1.bf16.msra.mxu0 %v1694
    %2287 = vmatprep.subr.bf16.mxu0 %v1698
    %2288 = vmatpush1.bf16.msra.mxu0 %v1697
    %2289 = vmatprep.subr.bf16.mxu0 %v1701
    %2290 = vmatpush1.bf16.msra.mxu0 %v1700
    %2291 = vmatprep.subr.bf16.mxu0 %v1704
    %2292 = vmatpush1.bf16.msra.mxu0 %v1703
    %2293 = vmatprep.subr.bf16.mxu0 %v1707
    %2294 = vmatpush1.bf16.msra.mxu0 %v1706
    %2295 = vmatprep.subr.bf16.mxu0 %v1710
    %2296 = vmatpush1.bf16.msra.mxu0 %v1709
    %2297 = vmatprep.subr.bf16.mxu0 %v1713
    %2298 = vmatpush1.bf16.msra.mxu0 %v1712
    %2299 = vmatprep.subr.bf16.mxu0 %v1716
    %2300 = vmatpush1.bf16.msra.mxu0 %v1715
    %2301 = vmatprep.subr.bf16.mxu0 %v1719
    %2302 = vmatpush1.bf16.msra.mxu0 %v1718
    %2303 = vmatprep.subr.bf16.mxu0 %v1722
    %2304 = vmatpush1.bf16.msra.mxu0 %v1721
    %2305 = vmatprep.mubr.bf16.mxu0 %v201
    %2306 = vmatmul.mubr.bf16.gmra.mrb[0].mxu0 %v200
    %v2307 = vpop.f32.mrb[0].mxu0
    %v2308 = vadd.f32 %v2267, %v2307
    %v2309 = vpop.f32.mrb[0].mxu0
    %v2310 = vadd.f32 %v2269, %v2309
    %v2311 = vpop.f32.mrb[0].mxu0
    %v2312 = vpop.f32.mrb[0].mxu0
    %2313 = vdwg.mxu0
    %2314 = vmatprep.subr.bf16.mxu0 %v1725
    %2315 = vmatpush1.bf16.msra.mxu0 %v1724
    %2316 = vmatprep.subr.bf16.mxu0 %v1728
    %2317 = vmatpush1.bf16.msra.mxu0 %v1727
    %2318 = vmatprep.subr.bf16.mxu0 %v1731
    %2319 = vmatpush1.bf16.msra.mxu0 %v1730
    %2320 = vmatprep.subr.bf16.mxu0 %v1734
    %2321 = vmatpush1.bf16.msra.mxu0 %v1733
    %2322 = vmatprep.subr.bf16.mxu0 %v1737
    %2323 = vmatpush1.bf16.msra.mxu0 %v1736
    %2324 = vmatprep.subr.bf16.mxu0 %v1740
    %2325 = vmatpush1.bf16.msra.mxu0 %v1739
    %2326 = vmatprep.subr.bf16.mxu0 %v1743
    %2327 = vmatpush1.bf16.msra.mxu0 %v1742
    %2328 = vmatprep.subr.bf16.mxu0 %v1746
    %2329 = vmatpush1.bf16.msra.mxu0 %v1745
    %2330 = vmatprep.subr.bf16.mxu0 %v1749
    %2331 = vmatpush1.bf16.msra.mxu0 %v1748
    %2332 = vmatprep.subr.bf16.mxu0 %v1752
    %2333 = vmatpush1.bf16.msra.mxu0 %v1751
    %2334 = vmatprep.subr.bf16.mxu0 %v1755
    %2335 = vmatpush1.bf16.msra.mxu0 %v1754
    %2336 = vmatprep.subr.bf16.mxu0 %v1758
    %2337 = vmatpush1.bf16.msra.mxu0 %v1757
    %2338 = vmatprep.subr.bf16.mxu0 %v1761
    %2339 = vmatpush1.bf16.msra.mxu0 %v1760
    %2340 = vmatprep.subr.bf16.mxu0 %v1764
    %2341 = vmatpush1.bf16.msra.mxu0 %v1763
    %2342 = vmatprep.subr.bf16.mxu0 %v1767
    %2343 = vmatpush1.bf16.msra.mxu0 %v1766
    %2344 = vmatprep.subr.bf16.mxu0 %v1770
    %2345 = vmatpush1.bf16.msra.mxu0 %v1769
    %2346 = vmatprep.mubr.bf16.mxu0 %v203
    %2347 = vmatmul.mubr.bf16.gmra.mrb[0].mxu0 %v202
    %v2348 = vpop.f32.mrb[0].mxu0
    %v2349 = vadd.f32 %v2308, %v2348
    %v2350 = vpop.f32.mrb[0].mxu0
    %v2351 = vadd.f32 %v2310, %v2350
    %v2352 = vpop.f32.mrb[0].mxu0
    %v2353 = vpop.f32.mrb[0].mxu0
    %2354 = vdwg.mxu0
    %2355 = vmatprep.subr.bf16.mxu0 %v1773
    %2356 = vmatpush1.bf16.msra.mxu0 %v1772
    %2357 = vmatprep.subr.bf16.mxu0 %v1776
    %2358 = vmatpush1.bf16.msra.mxu0 %v1775
    %2359 = vmatprep.subr.bf16.mxu0 %v1779
    %2360 = vmatpush1.bf16.msra.mxu0 %v1778
    %2361 = vmatprep.subr.bf16.mxu0 %v1782
    %2362 = vmatpush1.bf16.msra.mxu0 %v1781
    %2363 = vmatprep.subr.bf16.mxu0 %v1785
    %2364 = vmatpush1.bf16.msra.mxu0 %v1784
    %2365 = vmatprep.subr.bf16.mxu0 %v1788
    %2366 = vmatpush1.bf16.msra.mxu0 %v1787
    %2367 = vmatprep.subr.bf16.mxu0 %v1791
    %2368 = vmatpush1.bf16.msra.mxu0 %v1790
    %2369 = vmatprep.subr.bf16.mxu0 %v1794
    %2370 = vmatpush1.bf16.msra.mxu0 %v1793
    %2371 = vmatprep.subr.bf16.mxu0 %v1797
    %2372 = vmatpush1.bf16.msra.mxu0 %v1796
    %2373 = vmatprep.subr.bf16.mxu0 %v1800
    %2374 = vmatpush1.bf16.msra.mxu0 %v1799
    %2375 = vmatprep.subr.bf16.mxu0 %v1803
    %2376 = vmatpush1.bf16.msra.mxu0 %v1802
    %2377 = vmatprep.subr.bf16.mxu0 %v1806
    %2378 = vmatpush1.bf16.msra.mxu0 %v1805
    %2379 = vmatprep.subr.bf16.mxu0 %v1809
    %2380 = vmatpush1.bf16.msra.mxu0 %v1808
    %2381 = vmatprep.subr.bf16.mxu0 %v1812
    %2382 = vmatpush1.bf16.msra.mxu0 %v1811
    %2383 = vmatprep.subr.bf16.mxu0 %v1815
    %2384 = vmatpush1.bf16.msra.mxu0 %v1814
    %2385 = vmatprep.subr.bf16.mxu0 %v1818
    %2386 = vmatpush1.bf16.msra.mxu0 %v1817
    %2387 = vmatprep.mubr.bf16.mxu0 %v205
    %2388 = vmatmul.mubr.bf16.gmra.mrb[0].mxu0 %v204
    %v2389 = vpop.f32.mrb[0].mxu0
    %v2390 = vadd.f32 %v2349, %v2389
    %v2391 = vpop.f32.mrb[0].mxu0
    %v2392 = vadd.f32 %v2351, %v2391
    %v2393 = vpop.f32.mrb[0].mxu0
    %v2394 = vpop.f32.mrb[0].mxu0
    %2395 = vdwg.mxu0
    %2396 = vmatprep.subr.bf16.mxu0 %v1821
    %2397 = vmatpush1.bf16.msra.mxu0 %v1820
    %2398 = vmatprep.subr.bf16.mxu0 %v1824
    %2399 = vmatpush1.bf16.msra.mxu0 %v1823
    %2400 = vmatprep.subr.bf16.mxu0 %v1827
    %2401 = vmatpush1.bf16.msra.mxu0 %v1826
    %2402 = vmatprep.subr.bf16.mxu0 %v1830
    %2403 = vmatpush1.bf16.msra.mxu0 %v1829
    %2404 = vmatprep.subr.bf16.mxu0 %v1833
    %2405 = vmatpush1.bf16.msra.mxu0 %v1832
    %2406 = vmatprep.subr.bf16.mxu0 %v1836
    %2407 = vmatpush1.bf16.msra.mxu0 %v1835
    %2408 = vmatprep.subr.bf16.mxu0 %v1839
    %2409 = vmatpush1.bf16.msra.mxu0 %v1838
    %2410 = vmatprep.subr.bf16.mxu0 %v1842
    %2411 = vmatpush1.bf16.msra.mxu0 %v1841
    %2412 = vmatprep.subr.bf16.mxu0 %v1845
    %2413 = vmatpush1.bf16.msra.mxu0 %v1844
    %2414 = vmatprep.subr.bf16.mxu0 %v1848
    %2415 = vmatpush1.bf16.msra.mxu0 %v1847
    %2416 = vmatprep.subr.bf16.mxu0 %v1851
    %2417 = vmatpush1.bf16.msra.mxu0 %v1850
    %2418 = vmatprep.subr.bf16.mxu0 %v1854
    %2419 = vmatpush1.bf16.msra.mxu0 %v1853
    %2420 = vmatprep.subr.bf16.mxu0 %v1857
    %2421 = vmatpush1.bf16.msra.mxu0 %v1856
    %2422 = vmatprep.subr.bf16.mxu0 %v1860
    %2423 = vmatpush1.bf16.msra.mxu0 %v1859
    %2424 = vmatprep.subr.bf16.mxu0 %v1863
    %2425 = vmatpush1.bf16.msra.mxu0 %v1862
    %2426 = vmatprep.subr.bf16.mxu0 %v1866
    %2427 = vmatpush1.bf16.msra.mxu0 %v1865
    %2428 = vmatprep.mubr.bf16.mxu0 %v207
    %2429 = vmatmul.mubr.bf16.gmra.mrb[0].mxu0 %v206
    %v2430 = vpop.f32.mrb[0].mxu0
    %v2431 = vadd.f32 %v2390, %v2430
    %v2432 = vpop.f32.mrb[0].mxu0
    %v2433 = vadd.f32 %v2392, %v2432
    %v2434 = vpop.f32.mrb[0].mxu0
    %v2435 = vpop.f32.mrb[0].mxu0
    %2436 = vdwg.mxu0
    %2437 = vmatprep.subr.bf16.mxu0 %v1869
    %2438 = vmatpush1.bf16.msra.mxu0 %v1868
    %2439 = vmatprep.subr.bf16.mxu0 %v1872
    %2440 = vmatpush1.bf16.msra.mxu0 %v1871
    %2441 = vmatprep.subr.bf16.mxu0 %v1875
    %2442 = vmatpush1.bf16.msra.mxu0 %v1874
    %2443 = vmatprep.subr.bf16.mxu0 %v1878
    %2444 = vmatpush1.bf16.msra.mxu0 %v1877
    %2445 = vmatprep.subr.bf16.mxu0 %v1881
    %2446 = vmatpush1.bf16.msra.mxu0 %v1880
    %2447 = vmatprep.subr.bf16.mxu0 %v1884
    %2448 = vmatpush1.bf16.msra.mxu0 %v1883
    %2449 = vmatprep.subr.bf16.mxu0 %v1887
    %2450 = vmatpush1.bf16.msra.mxu0 %v1886
    %2451 = vmatprep.subr.bf16.mxu0 %v1890
    %2452 = vmatpush1.bf16.msra.mxu0 %v1889
    %2453 = vmatprep.subr.bf16.mxu0 %v1893
    %2454 = vmatpush1.bf16.msra.mxu0 %v1892
    %2455 = vmatprep.subr.bf16.mxu0 %v1896
    %2456 = vmatpush1.bf16.msra.mxu0 %v1895
    %2457 = vmatprep.subr.bf16.mxu0 %v1899
    %2458 = vmatpush1.bf16.msra.mxu0 %v1898
    %2459 = vmatprep.subr.bf16.mxu0 %v1902
    %2460 = vmatpush1.bf16.msra.mxu0 %v1901
    %2461 = vmatprep.subr.bf16.mxu0 %v1905
    %2462 = vmatpush1.bf16.msra.mxu0 %v1904
    %2463 = vmatprep.subr.bf16.mxu0 %v1908
    %2464 = vmatpush1.bf16.msra.mxu0 %v1907
    %2465 = vmatprep.subr.bf16.mxu0 %v1911
    %2466 = vmatpush1.bf16.msra.mxu0 %v1910
    %2467 = vmatprep.subr.bf16.mxu0 %v1914
    %2468 = vmatpush1.bf16.msra.mxu0 %v1913
    %2469 = vmatprep.mubr.bf16.mxu0 %v209
    %2470 = vmatmul.mubr.bf16.gmra.mrb[0].mxu0 %v208
    %v2471 = vpop.f32.mrb[0].mxu0
    %v2472 = vadd.f32 %v2431, %v2471
    %v2473 = vpop.f32.mrb[0].mxu0
    %v2474 = vadd.f32 %v2433, %v2473
    %v2475 = vpop.f32.mrb[0].mxu0
    %v2476 = vpop.f32.mrb[0].mxu0
    %2477 = vdwg.mxu0
    %2478 = vmatprep.subr.bf16.mxu0 %v1917
    %2479 = vmatpush1.bf16.msra.mxu0 %v1916
    %2480 = vmatprep.subr.bf16.mxu0 %v1920
    %2481 = vmatpush1.bf16.msra.mxu0 %v1919
    %2482 = vmatprep.subr.bf16.mxu0 %v1923
    %2483 = vmatpush1.bf16.msra.mxu0 %v1922
    %2484 = vmatprep.subr.bf16.mxu0 %v1926
    %2485 = vmatpush1.bf16.msra.mxu0 %v1925
    %2486 = vmatprep.subr.bf16.mxu0 0
    %2487 = vmatpush1.bf16.msra.mxu0 0
    %2488 = vmatprep.subr.bf16.mxu0 0
    %2489 = vmatpush1.bf16.msra.mxu0 0
    %2490 = vmatprep.subr.bf16.mxu0 0
    %2491 = vmatpush1.bf16.msra.mxu0 0
    %2492 = vmatprep.subr.bf16.mxu0 0
    %2493 = vmatpush1.bf16.msra.mxu0 0
    %2494 = vmatprep.subr.bf16.mxu0 0
    %2495 = vmatpush1.bf16.msra.mxu0 0
    %2496 = vmatprep.subr.bf16.mxu0 0
    %2497 = vmatpush1.bf16.msra.mxu0 0
    %2498 = vmatprep.subr.bf16.mxu0 0
    %2499 = vmatpush1.bf16.msra.mxu0 0
    %2500 = vmatprep.subr.bf16.mxu0 0
    %2501 = vmatpush1.bf16.msra.mxu0 0
    %2502 = vmatprep.subr.bf16.mxu0 0
    %2503 = vmatpush1.bf16.msra.mxu0 0
    %2504 = vmatprep.subr.bf16.mxu0 0
    %2505 = vmatpush1.bf16.msra.mxu0 0
    %2506 = vmatprep.subr.bf16.mxu0 0
    %2507 = vmatpush1.bf16.msra.mxu0 0
    %2508 = vmatprep.subr.bf16.mxu0 0
    %2509 = vmatpush1.bf16.msra.mxu0 0
    %2510 = vmatprep.mubr.bf16.mxu0 0
    %2511 = vmatmul.mubr.bf16.gmra.mrb[0].mxu0 %v2230
    %v2512 = vpop.f32.mrb[0].mxu0
    %v2513 = vadd.f32 %v2472, %v2512
    %v2514 = vpop.f32.mrb[0].mxu0
    %v2515 = vadd.f32 %v2474, %v2514
    %v2516 = vpop.f32.mrb[0].mxu0
    %v2517 = vpop.f32.mrb[0].mxu0
    %2518 = vdwg.mxu0
    %2519 = vmatprep.subr.bf16.mxu0 0
    %2520 = vmatpush1.bf16.msra.mxu0 %v1630
    %2521 = vmatprep.subr.bf16.mxu0 0
    %2522 = vmatpush1.bf16.msra.mxu0 %v1633
    %2523 = vmatprep.subr.bf16.mxu0 0
    %2524 = vmatpush1.bf16.msra.mxu0 %v1636
    %2525 = vmatprep.subr.bf16.mxu0 0
    %2526 = vmatpush1.bf16.msra.mxu0 %v1639
    %2527 = vmatprep.subr.bf16.mxu0 0
    %2528 = vmatpush1.bf16.msra.mxu0 %v1642
    %2529 = vmatprep.subr.bf16.mxu0 0
    %2530 = vmatpush1.bf16.msra.mxu0 %v1645
    %2531 = vmatprep.subr.bf16.mxu0 0
    %2532 = vmatpush1.bf16.msra.mxu0 %v1648
    %2533 = vmatprep.subr.bf16.mxu0 0
    %2534 = vmatpush1.bf16.msra.mxu0 %v1651
    %2535 = vmatprep.subr.bf16.mxu0 0
    %2536 = vmatpush1.bf16.msra.mxu0 %v1654
    %2537 = vmatprep.subr.bf16.mxu0 0
    %2538 = vmatpush1.bf16.msra.mxu0 %v1657
    %2539 = vmatprep.subr.bf16.mxu0 0
    %2540 = vmatpush1.bf16.msra.mxu0 %v1660
    %2541 = vmatprep.subr.bf16.mxu0 0
    %2542 = vmatpush1.bf16.msra.mxu0 %v1663
    %2543 = vmatprep.subr.bf16.mxu0 0
    %2544 = vmatpush1.bf16.msra.mxu0 %v1666
    %2545 = vmatprep.subr.bf16.mxu0 0
    %2546 = vmatpush1.bf16.msra.mxu0 %v1669
    %2547 = vmatprep.subr.bf16.mxu0 0
    %2548 = vmatpush1.bf16.msra.mxu0 %v1672
    %2549 = vmatprep.subr.bf16.mxu0 0
    %2550 = vmatpush1.bf16.msra.mxu0 %v1675
    %2551 = vmatprep.mubr.bf16.mxu0 %v199
    %2552 = vmatmul.mubr.bf16.gmra.mrb[0].mxu0 %v198
    %v2553 = vpop.f32.mrb[0].mxu0
    %v2554 = vadd.f32 %v624, %v2553
    %v2555 = vpop.f32.mrb[0].mxu0
    %v2556 = vpop.f32.mrb[0].mxu0
    %v2557 = vpop.f32.mrb[0].mxu0
    %2558 = vdwg.mxu0
    %2559 = vmatprep.subr.bf16.mxu0 0
    %2560 = vmatpush1.bf16.msra.mxu0 %v1678
    %2561 = vmatprep.subr.bf16.mxu0 0
    %2562 = vmatpush1.bf16.msra.mxu0 %v1681
    %2563 = vmatprep.subr.bf16.mxu0 0
    %2564 = vmatpush1.bf16.msra.mxu0 %v1684
    %2565 = vmatprep.subr.bf16.mxu0 0
    %2566 = vmatpush1.bf16.msra.mxu0 %v1687
    %2567 = vmatprep.subr.bf16.mxu0 0
    %2568 = vmatpush1.bf16.msra.mxu0 %v1690
    %2569 = vmatprep.subr.bf16.mxu0 0
    %2570 = vmatpush1.bf16.msra.mxu0 %v1693
    %2571 = vmatprep.subr.bf16.mxu0 0
    %2572 = vmatpush1.bf16.msra.mxu0 %v1696
    %2573 = vmatprep.subr.bf16.mxu0 0
    %2574 = vmatpush1.bf16.msra.mxu0 %v1699
    %2575 = vmatprep.subr.bf16.mxu0 0
    %2576 = vmatpush1.bf16.msra.mxu0 %v1702
    %2577 = vmatprep.subr.bf16.mxu0 0
    %2578 = vmatpush1.bf16.msra.mxu0 %v1705
    %2579 = vmatprep.subr.bf16.mxu0 0
    %2580 = vmatpush1.bf16.msra.mxu0 %v1708
    %2581 = vmatprep.subr.bf16.mxu0 0
    %2582 = vmatpush1.bf16.msra.mxu0 %v1711
    %2583 = vmatprep.subr.bf16.mxu0 0
    %2584 = vmatpush1.bf16.msra.mxu0 %v1714
    %2585 = vmatprep.subr.bf16.mxu0 0
    %2586 = vmatpush1.bf16.msra.mxu0 %v1717
    %2587 = vmatprep.subr.bf16.mxu0 0
    %2588 = vmatpush1.bf16.msra.mxu0 %v1720
    %2589 = vmatprep.subr.bf16.mxu0 0
    %2590 = vmatpush1.bf16.msra.mxu0 %v1723
    %2591 = vmatprep.mubr.bf16.mxu0 %v201
    %2592 = vmatmul.mubr.bf16.gmra.mrb[0].mxu0 %v200
    %v2593 = vpop.f32.mrb[0].mxu0
    %v2594 = vadd.f32 %v2554, %v2593
    %v2595 = vpop.f32.mrb[0].mxu0
    %v2596 = vpop.f32.mrb[0].mxu0
    %v2597 = vpop.f32.mrb[0].mxu0
    %2598 = vdwg.mxu0
    %2599 = vmatprep.subr.bf16.mxu0 0
    %2600 = vmatpush1.bf16.msra.mxu0 %v1726
    %2601 = vmatprep.subr.bf16.mxu0 0
    %2602 = vmatpush1.bf16.msra.mxu0 %v1729
    %2603 = vmatprep.subr.bf16.mxu0 0
    %2604 = vmatpush1.bf16.msra.mxu0 %v1732
    %2605 = vmatprep.subr.bf16.mxu0 0
    %2606 = vmatpush1.bf16.msra.mxu0 %v1735
    %2607 = vmatprep.subr.bf16.mxu0 0
    %2608 = vmatpush1.bf16.msra.mxu0 %v1738
    %2609 = vmatprep.subr.bf16.mxu0 0
    %2610 = vmatpush1.bf16.msra.mxu0 %v1741
    %2611 = vmatprep.subr.bf16.mxu0 0
    %2612 = vmatpush1.bf16.msra.mxu0 %v1744
    %2613 = vmatprep.subr.bf16.mxu0 0
    %2614 = vmatpush1.bf16.msra.mxu0 %v1747
    %2615 = vmatprep.subr.bf16.mxu0 0
    %2616 = vmatpush1.bf16.msra.mxu0 %v1750
    %2617 = vmatprep.subr.bf16.mxu0 0
    %2618 = vmatpush1.bf16.msra.mxu0 %v1753
    %2619 = vmatprep.subr.bf16.mxu0 0
    %2620 = vmatpush1.bf16.msra.mxu0 %v1756
    %2621 = vmatprep.subr.bf16.mxu0 0
    %2622 = vmatpush1.bf16.msra.mxu0 %v1759
    %2623 = vmatprep.subr.bf16.mxu0 0
    %2624 = vmatpush1.bf16.msra.mxu0 %v1762
    %2625 = vmatprep.subr.bf16.mxu0 0
    %2626 = vmatpush1.bf16.msra.mxu0 %v1765
    %2627 = vmatprep.subr.bf16.mxu0 0
    %2628 = vmatpush1.bf16.msra.mxu0 %v1768
    %2629 = vmatprep.subr.bf16.mxu0 0
    %2630 = vmatpush1.bf16.msra.mxu0 %v1771
    %2631 = vmatprep.mubr.bf16.mxu0 %v203
    %2632 = vmatmul.mubr.bf16.gmra.mrb[0].mxu0 %v202
    %v2633 = vpop.f32.mrb[0].mxu0
    %v2634 = vadd.f32 %v2594, %v2633
    %v2635 = vpop.f32.mrb[0].mxu0
    %v2636 = vpop.f32.mrb[0].mxu0
    %v2637 = vpop.f32.mrb[0].mxu0
    %2638 = vdwg.mxu0
    %2639 = vmatprep.subr.bf16.mxu0 0
    %2640 = vmatpush1.bf16.msra.mxu0 %v1774
    %2641 = vmatprep.subr.bf16.mxu0 0
    %2642 = vmatpush1.bf16.msra.mxu0 %v1777
    %2643 = vmatprep.subr.bf16.mxu0 0
    %2644 = vmatpush1.bf16.msra.mxu0 %v1780
    %2645 = vmatprep.subr.bf16.mxu0 0
    %2646 = vmatpush1.bf16.msra.mxu0 %v1783
    %2647 = vmatprep.subr.bf16.mxu0 0
    %2648 = vmatpush1.bf16.msra.mxu0 %v1786
    %2649 = vmatprep.subr.bf16.mxu0 0
    %2650 = vmatpush1.bf16.msra.mxu0 %v1789
    %2651 = vmatprep.subr.bf16.mxu0 0
    %2652 = vmatpush1.bf16.msra.mxu0 %v1792
    %2653 = vmatprep.subr.bf16.mxu0 0
    %2654 = vmatpush1.bf16.msra.mxu0 %v1795
    %2655 = vmatprep.subr.bf16.mxu0 0
    %2656 = vmatpush1.bf16.msra.mxu0 %v1798
    %2657 = vmatprep.subr.bf16.mxu0 0
    %2658 = vmatpush1.bf16.msra.mxu0 %v1801
    %2659 = vmatprep.subr.bf16.mxu0 0
    %2660 = vmatpush1.bf16.msra.mxu0 %v1804
    %2661 = vmatprep.subr.bf16.mxu0 0
    %2662 = vmatpush1.bf16.msra.mxu0 %v1807
    %2663 = vmatprep.subr.bf16.mxu0 0
    %2664 = vmatpush1.bf16.msra.mxu0 %v1810
    %2665 = vmatprep.subr.bf16.mxu0 0
    %2666 = vmatpush1.bf16.msra.mxu0 %v1813
    %2667 = vmatprep.subr.bf16.mxu0 0
    %2668 = vmatpush1.bf16.msra.mxu0 %v1816
    %2669 = vmatprep.subr.bf16.mxu0 0
    %2670 = vmatpush1.bf16.msra.mxu0 %v1819
    %2671 = vmatprep.mubr.bf16.mxu0 %v205
    %2672 = vmatmul.mubr.bf16.gmra.mrb[0].mxu0 %v204
    %v2673 = vpop.f32.mrb[0].mxu0
    %v2674 = vadd.f32 %v2634, %v2673
    %v2675 = vpop.f32.mrb[0].mxu0
    %v2676 = vpop.f32.mrb[0].mxu0
    %v2677 = vpop.f32.mrb[0].mxu0
    %2678 = vdwg.mxu0
    %2679 = vmatprep.subr.bf16.mxu0 0
    %2680 = vmatpush1.bf16.msra.mxu0 %v1822
    %2681 = vmatprep.subr.bf16.mxu0 0
    %2682 = vmatpush1.bf16.msra.mxu0 %v1825
    %2683 = vmatprep.subr.bf16.mxu0 0
    %2684 = vmatpush1.bf16.msra.mxu0 %v1828
    %2685 = vmatprep.subr.bf16.mxu0 0
    %2686 = vmatpush1.bf16.msra.mxu0 %v1831
    %2687 = vmatprep.subr.bf16.mxu0 0
    %2688 = vmatpush1.bf16.msra.mxu0 %v1834
    %2689 = vmatprep.subr.bf16.mxu0 0
    %2690 = vmatpush1.bf16.msra.mxu0 %v1837
    %2691 = vmatprep.subr.bf16.mxu0 0
    %2692 = vmatpush1.bf16.msra.mxu0 %v1840
    %2693 = vmatprep.subr.bf16.mxu0 0
    %2694 = vmatpush1.bf16.msra.mxu0 %v1843
    %2695 = vmatprep.subr.bf16.mxu0 0
    %2696 = vmatpush1.bf16.msra.mxu0 %v1846
    %2697 = vmatprep.subr.bf16.mxu0 0
    %2698 = vmatpush1.bf16.msra.mxu0 %v1849
    %2699 = vmatprep.subr.bf16.mxu0 0
    %2700 = vmatpush1.bf16.msra.mxu0 %v1852
    %2701 = vmatprep.subr.bf16.mxu0 0
    %2702 = vmatpush1.bf16.msra.mxu0 %v1855
    %2703 = vmatprep.subr.bf16.mxu0 0
    %2704 = vmatpush1.bf16.msra.mxu0 %v1858
    %2705 = vmatprep.subr.bf16.mxu0 0
    %2706 = vmatpush1.bf16.msra.mxu0 %v1861
    %2707 = vmatprep.subr.bf16.mxu0 0
    %2708 = vmatpush1.bf16.msra.mxu0 %v1864
    %2709 = vmatprep.subr.bf16.mxu0 0
    %2710 = vmatpush1.bf16.msra.mxu0 %v1867
    %2711 = vmatprep.mubr.bf16.mxu0 %v207
    %2712 = vmatmul.mubr.bf16.gmra.mrb[0].mxu0 %v206
    %v2713 = vpop.f32.mrb[0].mxu0
    %v2714 = vadd.f32 %v2674, %v2713
    %v2715 = vpop.f32.mrb[0].mxu0
    %v2716 = vpop.f32.mrb[0].mxu0
    %v2717 = vpop.f32.mrb[0].mxu0
    %2718 = vdwg.mxu0
    %2719 = vmatprep.subr.bf16.mxu0 0
    %2720 = vmatpush1.bf16.msra.mxu0 %v1870
    %2721 = vmatprep.subr.bf16.mxu0 0
    %2722 = vmatpush1.bf16.msra.mxu0 %v1873
    %2723 = vmatprep.subr.bf16.mxu0 0
    %2724 = vmatpush1.bf16.msra.mxu0 %v1876
    %2725 = vmatprep.subr.bf16.mxu0 0
    %2726 = vmatpush1.bf16.msra.mxu0 %v1879
    %2727 = vmatprep.subr.bf16.mxu0 0
    %2728 = vmatpush1.bf16.msra.mxu0 %v1882
    %2729 = vmatprep.subr.bf16.mxu0 0
    %2730 = vmatpush1.bf16.msra.mxu0 %v1885
    %2731 = vmatprep.subr.bf16.mxu0 0
    %2732 = vmatpush1.bf16.msra.mxu0 %v1888
    %2733 = vmatprep.subr.bf16.mxu0 0
    %2734 = vmatpush1.bf16.msra.mxu0 %v1891
    %2735 = vmatprep.subr.bf16.mxu0 0
    %2736 = vmatpush1.bf16.msra.mxu0 %v1894
    %2737 = vmatprep.subr.bf16.mxu0 0
    %2738 = vmatpush1.bf16.msra.mxu0 %v1897
    %2739 = vmatprep.subr.bf16.mxu0 0
    %2740 = vmatpush1.bf16.msra.mxu0 %v1900
    %2741 = vmatprep.subr.bf16.mxu0 0
    %2742 = vmatpush1.bf16.msra.mxu0 %v1903
    %2743 = vmatprep.subr.bf16.mxu0 0
    %2744 = vmatpush1.bf16.msra.mxu0 %v1906
    %2745 = vmatprep.subr.bf16.mxu0 0
    %2746 = vmatpush1.bf16.msra.mxu0 %v1909
    %2747 = vmatprep.subr.bf16.mxu0 0
    %2748 = vmatpush1.bf16.msra.mxu0 %v1912
    %2749 = vmatprep.subr.bf16.mxu0 0
    %2750 = vmatpush1.bf16.msra.mxu0 %v1915
    %2751 = vmatprep.mubr.bf16.mxu0 %v209
    %2752 = vmatmul.mubr.bf16.gmra.mrb[0].mxu0 %v208
    %v2753 = vpop.f32.mrb[0].mxu0
    %v2754 = vadd.f32 %v2714, %v2753
    %v2755 = vpop.f32.mrb[0].mxu0
    %v2756 = vpop.f32.mrb[0].mxu0
    %v2757 = vpop.f32.mrb[0].mxu0
    %2758 = vdwg.mxu0
    %2759 = vmatprep.subr.bf16.mxu0 0
    %2760 = vmatpush1.bf16.msra.mxu0 %v1918
    %2761 = vmatprep.subr.bf16.mxu0 0
    %2762 = vmatpush1.bf16.msra.mxu0 %v1921
    %2763 = vmatprep.subr.bf16.mxu0 0
    %2764 = vmatpush1.bf16.msra.mxu0 %v1924
    %2765 = vmatprep.subr.bf16.mxu0 0
    %2766 = vmatpush1.bf16.msra.mxu0 %v1927
    %2767 = vmatprep.subr.bf16.mxu0 0
    %2768 = vmatpush1.bf16.msra.mxu0 0
    %2769 = vmatprep.subr.bf16.mxu0 0
    %2770 = vmatpush1.bf16.msra.mxu0 0
    %2771 = vmatprep.subr.bf16.mxu0 0
    %2772 = vmatpush1.bf16.msra.mxu0 0
    %2773 = vmatprep.subr.bf16.mxu0 0
    %2774 = vmatpush1.bf16.msra.mxu0 0
    %2775 = vmatprep.subr.bf16.mxu0 0
    %2776 = vmatpush1.bf16.msra.mxu0 0
    %2777 = vmatprep.subr.bf16.mxu0 0
    %2778 = vmatpush1.bf16.msra.mxu0 0
    %2779 = vmatprep.subr.bf16.mxu0 0
    %2780 = vmatpush1.bf16.msra.mxu0 0
    %2781 = vmatprep.subr.bf16.mxu0 0
    %2782 = vmatpush1.bf16.msra.mxu0 0
    %2783 = vmatprep.subr.bf16.mxu0 0
    %2784 = vmatpush1.bf16.msra.mxu0 0
    %2785 = vmatprep.subr.bf16.mxu0 0
    %2786 = vmatpush1.bf16.msra.mxu0 0
    %2787 = vmatprep.subr.bf16.mxu0 0
    %2788 = vmatpush1.bf16.msra.mxu0 0
    %2789 = vmatprep.subr.bf16.mxu0 0
    %2790 = vmatpush1.bf16.msra.mxu0 0
    %2791 = vmatprep.mubr.bf16.mxu0 0
    %2792 = vmatmul.mubr.bf16.gmra.mrb[0].mxu0 %v2230
    %v2793 = vpop.f32.mrb[0].mxu0
    %v2794 = vadd.f32 %v2754, %v2793
    %v2795 = vpop.f32.mrb[0].mxu0
    %v2796 = vpop.f32.mrb[0].mxu0
    %v2797 = vpop.f32.mrb[0].mxu0
    %2798 = vdwg.mxu0
    %vm2799 = vcmp.ge.f32.partialorder %v2513, 0.0
    %vm2800 = vcmp.ge.f32.partialorder %v2515, 0.0
    %vm2801 = vcmp.ge.f32.partialorder %v2794, 0.0
    %v2802 = vmul.f32 %v2513, 0.01
    %v2803 = vmul.f32 %v2515, 0.01
    %v2804 = vmul.f32 %v2794, 0.01
    %v2805 = vsel %vm2799, %v2513, %v2802
    %v2806 = vsel %vm2800, %v2515, %v2803
    %v2807 = vsel %vm2801, %v2794, %v2804
    %v2808 = vpack.c.bf16 %v2805, %v2805
    %v2809 = vld [vmem:[%s3] sm:$0xf]
    %v2810 = vld [vmem:[%s3 + $0x4] sm:$0xf]
    %v2811 = vld [vmem:[%s3 + $0x8] sm:$0xf]
    %v2812 = vld [vmem:[%s3 + $0xc] sm:$0xf]
    %v2813 = vld [vmem:[%s3 + $0x10] sm:$0xf]
    %v2814 = vld [vmem:[%s3 + $0x14] sm:$0xf]
    %v2815 = vld [vmem:[%s3 + $0x18] sm:$0xf]
    %v2816 = vld [vmem:[%s3 + $0x1c] sm:$0xf]
    %v2817 = vld [vmem:[%s3 + $0x20] sm:$0xf]
    %v2818 = vld [vmem:[%s3 + $0x24] sm:$0xf]
    %v2819 = vld [vmem:[%s3 + $0x28] sm:$0xf]
    %v2820 = vld [vmem:[%s3 + $0x2c] sm:$0xf]
    %v2821 = vld [vmem:[%s3 + $0x30] sm:$0xf]
    %v2822 = vld [vmem:[%s3 + $0x34] sm:$0xf]
    %v2823 = vld [vmem:[%s3 + $0x38] sm:$0xf]
    %v2824 = vld [vmem:[%s3 + $0x3c] sm:$0xf]
    %v2825 = vld [vmem:[%s4] sm:$0x1]
    %v2826 = vlaneseq
    %v2827 = vshrl.u32 %v2826, 7
    %v2828 = vsub.s32 0, %v2827
    %v2829 = vrot.slane %v2825, %v2828
    %v2846 = vunpack.c.l.b16 %v2809
    %v2847 = vunpack.c.l.b16 %v2810
    %v2848 = vunpack.c.l.b16 %v2811
    %v2849 = vunpack.c.l.b16 %v2812
    %v2850 = vunpack.c.l.b16 %v2813
    %v2851 = vunpack.c.l.b16 %v2814
    %v2852 = vunpack.c.l.b16 %v2815
    %v2853 = vunpack.c.l.b16 %v2816
    %v2854 = vunpack.c.l.b16 %v2817
    %v2855 = vunpack.c.l.b16 %v2818
    %v2856 = vunpack.c.l.b16 %v2819
    %v2857 = vunpack.c.l.b16 %v2820
    %v2858 = vunpack.c.l.b16 %v2821
    %v2859 = vunpack.c.l.b16 %v2822
    %v2860 = vunpack.c.l.b16 %v2823
    %v2861 = vunpack.c.l.b16 %v2824
    %v2862 = vpack.c.b16 %v2847, %v2846
    %v2863 = vpack.c.b16 %v2849, %v2848
    %v2864 = vpack.c.b16 %v2851, %v2850
    %v2865 = vpack.c.b16 %v2853, %v2852
    %v2866 = vpack.c.b16 %v2855, %v2854
    %v2867 = vpack.c.b16 %v2857, %v2856
    %v2868 = vpack.c.b16 %v2859, %v2858
    %v2869 = vpack.c.b16 %v2861, %v2860
    %2878 = vmatprep.subr.bf16.mxu0 0
    %2879 = vmatpush1.bf16.msra.mxu0 %v2862
    %2880 = vmatprep.subr.bf16.mxu0 0
    %2881 = vmatpush1.bf16.msra.mxu0 %v2863
    %2882 = vmatprep.subr.bf16.mxu0 0
    %2883 = vmatpush1.bf16.msra.mxu0 %v2864
    %2884 = vmatprep.subr.bf16.mxu0 0
    %2885 = vmatpush1.bf16.msra.mxu0 %v2865
    %2886 = vmatprep.subr.bf16.mxu0 0
    %2887 = vmatpush1.bf16.msra.mxu0 %v2866
    %2888 = vmatprep.subr.bf16.mxu0 0
    %2889 = vmatpush1.bf16.msra.mxu0 %v2867
    %2890 = vmatprep.subr.bf16.mxu0 0
    %2891 = vmatpush1.bf16.msra.mxu0 %v2868
    %2892 = vmatprep.subr.bf16.mxu0 0
    %2893 = vmatpush1.bf16.msra.mxu0 %v2869
    %2894 = vmatprep.subr.bf16.mxu0 0
    %2895 = vmatpush1.bf16.msra.mxu0 0
    %2896 = vmatprep.subr.bf16.mxu0 0
    %2897 = vmatpush1.bf16.msra.mxu0 0
    %2898 = vmatprep.subr.bf16.mxu0 0
    %2899 = vmatpush1.bf16.msra.mxu0 0
    %2900 = vmatprep.subr.bf16.mxu0 0
    %2901 = vmatpush1.bf16.msra.mxu0 0
    %2902 = vmatprep.subr.bf16.mxu0 0
    %2903 = vmatpush1.bf16.msra.mxu0 0
    %2904 = vmatprep.subr.bf16.mxu0 0
    %2905 = vmatpush1.bf16.msra.mxu0 0
    %2906 = vmatprep.subr.bf16.mxu0 0
    %2907 = vmatpush1.bf16.msra.mxu0 0
    %2908 = vmatprep.subr.bf16.mxu0 0
    %2909 = vmatpush1.bf16.msra.mxu0 0
    %2910 = vmatprep.mubr.bf16.mxu0 0
    %2911 = vmatmul.mubr.bf16.gmra.mrb[0].mxu0 %v2808
    %v2912 = vpop.f32.mrb[0].mxu0
    %v2913 = vadd.f32 %v2829, %v2912
    %v2914 = vpop.f32.mrb[0].mxu0
    %v2915 = vpop.f32.mrb[0].mxu0
    %v2916 = vpop.f32.mrb[0].mxu0
    %2917 = vdwg.mxu0
    %vm2918 = vcmp.ge.f32.partialorder %v2913, 0.0
    %v2919 = vmul.f32 %v2913, 0.01
    %v2920 = vsel %vm2918, %v2913, %v2919
    %v2921 = vadd.f32 %v2920, %v2806
    %v2922 = vpack.c.bf16 %v2921, %v2921
    %s2923 = scalar_lea.vmem %s3, 64
    %v2924 = vld [vmem:[%s2923] sm:$0xf]
    %v2925 = vld [vmem:[%s2923 + $0x4] sm:$0xf]
    %v2926 = vld [vmem:[%s2923 + $0x8] sm:$0xf]
    %v2927 = vld [vmem:[%s2923 + $0xc] sm:$0xf]
    %v2928 = vld [vmem:[%s2923 + $0x10] sm:$0xf]
    %v2929 = vld [vmem:[%s2923 + $0x14] sm:$0xf]
    %v2930 = vld [vmem:[%s2923 + $0x18] sm:$0xf]
    %v2931 = vld [vmem:[%s2923 + $0x1c] sm:$0xf]
    %v2932 = vld [vmem:[%s2923 + $0x20] sm:$0xf]
    %v2933 = vld [vmem:[%s2923 + $0x24] sm:$0xf]
    %v2934 = vld [vmem:[%s2923 + $0x28] sm:$0xf]
    %v2935 = vld [vmem:[%s2923 + $0x2c] sm:$0xf]
    %v2936 = vld [vmem:[%s2923 + $0x30] sm:$0xf]
    %v2937 = vld [vmem:[%s2923 + $0x34] sm:$0xf]
    %v2938 = vld [vmem:[%s2923 + $0x38] sm:$0xf]
    %v2939 = vld [vmem:[%s2923 + $0x3c] sm:$0xf]
    %v2940 = vld [vmem:[%s4 + $0x1] sm:$0x1]
    %v2941 = vlaneseq
    %v2942 = vshrl.u32 %v2941, 7
    %v2943 = vsub.s32 0, %v2942
    %v2944 = vrot.slane %v2940, %v2943
    %v2961 = vunpack.c.l.b16 %v2924
    %v2962 = vunpack.c.l.b16 %v2925
    %v2963 = vunpack.c.l.b16 %v2926
    %v2964 = vunpack.c.l.b16 %v2927
    %v2965 = vunpack.c.l.b16 %v2928
    %v2966 = vunpack.c.l.b16 %v2929
    %v2967 = vunpack.c.l.b16 %v2930
    %v2968 = vunpack.c.l.b16 %v2931
    %v2969 = vunpack.c.l.b16 %v2932
    %v2970 = vunpack.c.l.b16 %v2933
    %v2971 = vunpack.c.l.b16 %v2934
    %v2972 = vunpack.c.l.b16 %v2935
    %v2973 = vunpack.c.l.b16 %v2936
    %v2974 = vunpack.c.l.b16 %v2937
    %v2975 = vunpack.c.l.b16 %v2938
    %v2976 = vunpack.c.l.b16 %v2939
    %v2977 = vpack.c.b16 %v2962, %v2961
    %v2978 = vpack.c.b16 %v2964, %v2963
    %v2979 = vpack.c.b16 %v2966, %v2965
    %v2980 = vpack.c.b16 %v2968, %v2967
    %v2981 = vpack.c.b16 %v2970, %v2969
    %v2982 = vpack.c.b16 %v2972, %v2971
    %v2983 = vpack.c.b16 %v2974, %v2973
    %v2984 = vpack.c.b16 %v2976, %v2975
    %2993 = vmatprep.subr.bf16.mxu0 0
    %2994 = vmatpush1.bf16.msra.mxu0 %v2977
    %2995 = vmatprep.subr.bf16.mxu0 0
    %2996 = vmatpush1.bf16.msra.mxu0 %v2978
    %2997 = vmatprep.subr.bf16.mxu0 0
    %2998 = vmatpush1.bf16.msra.mxu0 %v2979
    %2999 = vmatprep.subr.bf16.mxu0 0
    %3000 = vmatpush1.bf16.msra.mxu0 %v2980
    %3001 = vmatprep.subr.bf16.mxu0 0
    %3002 = vmatpush1.bf16.msra.mxu0 %v2981
    %3003 = vmatprep.subr.bf16.mxu0 0
    %3004 = vmatpush1.bf16.msra.mxu0 %v2982
    %3005 = vmatprep.subr.bf16.mxu0 0
    %3006 = vmatpush1.bf16.msra.mxu0 %v2983
    %3007 = vmatprep.subr.bf16.mxu0 0
    %3008 = vmatpush1.bf16.msra.mxu0 %v2984
    %3009 = vmatprep.subr.bf16.mxu0 0
    %3010 = vmatpush1.bf16.msra.mxu0 0
    %3011 = vmatprep.subr.bf16.mxu0 0
    %3012 = vmatpush1.bf16.msra.mxu0 0
    %3013 = vmatprep.subr.bf16.mxu0 0
    %3014 = vmatpush1.bf16.msra.mxu0 0
    %3015 = vmatprep.subr.bf16.mxu0 0
    %3016 = vmatpush1.bf16.msra.mxu0 0
    %3017 = vmatprep.subr.bf16.mxu0 0
    %3018 = vmatpush1.bf16.msra.mxu0 0
    %3019 = vmatprep.subr.bf16.mxu0 0
    %3020 = vmatpush1.bf16.msra.mxu0 0
    %3021 = vmatprep.subr.bf16.mxu0 0
    %3022 = vmatpush1.bf16.msra.mxu0 0
    %3023 = vmatprep.subr.bf16.mxu0 0
    %3024 = vmatpush1.bf16.msra.mxu0 0
    %3025 = vmatprep.mubr.bf16.mxu0 0
    %3026 = vmatmul.mubr.bf16.gmra.mrb[0].mxu0 %v2922
    %v3027 = vpop.f32.mrb[0].mxu0
    %v3028 = vadd.f32 %v2944, %v3027
    %v3029 = vpop.f32.mrb[0].mxu0
    %v3030 = vpop.f32.mrb[0].mxu0
    %v3031 = vpop.f32.mrb[0].mxu0
    %3032 = vdwg.mxu0
    %vm3033 = vcmp.ge.f32.partialorder %v3028, 0.0
    %v3034 = vmul.f32 %v3028, 0.01
    %v3035 = vsel %vm3033, %v3028, %v3034
    %v3036 = vadd.f32 %v3035, %v2807
    %v3037 = vpack.c.bf16 %v3036, %v3036
    %s3038 = scalar_lea.vmem %s3, 128
    %v3039 = vld [vmem:[%s3038] sm:$0xf]
    %v3040 = vld [vmem:[%s3038 + $0x4] sm:$0xf]
    %v3041 = vld [vmem:[%s3038 + $0x8] sm:$0xf]
    %v3042 = vld [vmem:[%s3038 + $0xc] sm:$0xf]
    %v3043 = vld [vmem:[%s3038 + $0x10] sm:$0xf]
    %v3044 = vld [vmem:[%s3038 + $0x14] sm:$0xf]
    %v3045 = vld [vmem:[%s3038 + $0x18] sm:$0xf]
    %v3046 = vld [vmem:[%s3038 + $0x1c] sm:$0xf]
    %v3047 = vld [vmem:[%s3038 + $0x20] sm:$0xf]
    %v3048 = vld [vmem:[%s3038 + $0x24] sm:$0xf]
    %v3049 = vld [vmem:[%s3038 + $0x28] sm:$0xf]
    %v3050 = vld [vmem:[%s3038 + $0x2c] sm:$0xf]
    %v3051 = vld [vmem:[%s3038 + $0x30] sm:$0xf]
    %v3052 = vld [vmem:[%s3038 + $0x34] sm:$0xf]
    %v3053 = vld [vmem:[%s3038 + $0x38] sm:$0xf]
    %v3054 = vld [vmem:[%s3038 + $0x3c] sm:$0xf]
    %v3055 = vld [vmem:[%s4 + $0x2] sm:$0x1]
    %v3056 = vlaneseq
    %v3057 = vshrl.u32 %v3056, 7
    %v3058 = vsub.s32 0, %v3057
    %v3059 = vrot.slane %v3055, %v3058
    %v3076 = vunpack.c.l.b16 %v3039
    %v3077 = vunpack.c.l.b16 %v3040
    %v3078 = vunpack.c.l.b16 %v3041
    %v3079 = vunpack.c.l.b16 %v3042
    %v3080 = vunpack.c.l.b16 %v3043
    %v3081 = vunpack.c.l.b16 %v3044
    %v3082 = vunpack.c.l.b16 %v3045
    %v3083 = vunpack.c.l.b16 %v3046
    %v3084 = vunpack.c.l.b16 %v3047
    %v3085 = vunpack.c.l.b16 %v3048
    %v3086 = vunpack.c.l.b16 %v3049
    %v3087 = vunpack.c.l.b16 %v3050
    %v3088 = vunpack.c.l.b16 %v3051
    %v3089 = vunpack.c.l.b16 %v3052
    %v3090 = vunpack.c.l.b16 %v3053
    %v3091 = vunpack.c.l.b16 %v3054
    %v3092 = vpack.c.b16 %v3077, %v3076
    %v3093 = vpack.c.b16 %v3079, %v3078
    %v3094 = vpack.c.b16 %v3081, %v3080
    %v3095 = vpack.c.b16 %v3083, %v3082
    %v3096 = vpack.c.b16 %v3085, %v3084
    %v3097 = vpack.c.b16 %v3087, %v3086
    %v3098 = vpack.c.b16 %v3089, %v3088
    %v3099 = vpack.c.b16 %v3091, %v3090
    %3108 = vmatprep.subr.bf16.mxu0 0
    %3109 = vmatpush1.bf16.msra.mxu0 %v3092
    %3110 = vmatprep.subr.bf16.mxu0 0
    %3111 = vmatpush1.bf16.msra.mxu0 %v3093
    %3112 = vmatprep.subr.bf16.mxu0 0
    %3113 = vmatpush1.bf16.msra.mxu0 %v3094
    %3114 = vmatprep.subr.bf16.mxu0 0
    %3115 = vmatpush1.bf16.msra.mxu0 %v3095
    %3116 = vmatprep.subr.bf16.mxu0 0
    %3117 = vmatpush1.bf16.msra.mxu0 %v3096
    %3118 = vmatprep.subr.bf16.mxu0 0
    %3119 = vmatpush1.bf16.msra.mxu0 %v3097
    %3120 = vmatprep.subr.bf16.mxu0 0
    %3121 = vmatpush1.bf16.msra.mxu0 %v3098
    %3122 = vmatprep.subr.bf16.mxu0 0
    %3123 = vmatpush1.bf16.msra.mxu0 %v3099
    %3124 = vmatprep.subr.bf16.mxu0 0
    %3125 = vmatpush1.bf16.msra.mxu0 0
    %3126 = vmatprep.subr.bf16.mxu0 0
    %3127 = vmatpush1.bf16.msra.mxu0 0
    %3128 = vmatprep.subr.bf16.mxu0 0
    %3129 = vmatpush1.bf16.msra.mxu0 0
    %3130 = vmatprep.subr.bf16.mxu0 0
    %3131 = vmatpush1.bf16.msra.mxu0 0
    %3132 = vmatprep.subr.bf16.mxu0 0
    %3133 = vmatpush1.bf16.msra.mxu0 0
    %3134 = vmatprep.subr.bf16.mxu0 0
    %3135 = vmatpush1.bf16.msra.mxu0 0
    %3136 = vmatprep.subr.bf16.mxu0 0
    %3137 = vmatpush1.bf16.msra.mxu0 0
    %3138 = vmatprep.subr.bf16.mxu0 0
    %3139 = vmatpush1.bf16.msra.mxu0 0
    %3140 = vmatprep.mubr.bf16.mxu0 0
    %3141 = vmatmul.mubr.bf16.gmra.mrb[0].mxu0 %v3037
    %v3142 = vpop.f32.mrb[0].mxu0
    %v3143 = vadd.f32 %v3059, %v3142
    %v3144 = vpop.f32.mrb[0].mxu0
    %v3145 = vpop.f32.mrb[0].mxu0
    %v3146 = vpop.f32.mrb[0].mxu0
    %3147 = vdwg.mxu0
    %vm3148 = vcmp.ge.f32.partialorder %v3143, 0.0
    %v3149 = vmul.f32 %v3143, 0.01
    %v3150 = vsel %vm3148, %v3143, %v3149
    %v3151 = vld [vmem:[%s5] sm:$0x1]
    %v3153 = vlaneseq
    %v3154 = vshrl.u32 %v3153, 7
    %v3155 = vsub.s32 0, %v3154
    %v3156 = vrot.slane %v3151, %v3155
    %v3158 = vmul.f32 %v3150, %v3156
    %3159 = vadd.xlane.f32.xlu0 %v3158
    %v3160 = vpop.xlane.xlu0 %3159
    %s3161 = sld [smem:[#allocation2]]
    %v3162 = vstv %s3161
    %v3163 = vadd.f32 %v3160, %v3162
    %vm3164 = vcmask 7168
    %3165 = vst.msk [vmem:[#allocation3] sm:$0xff] %vm3164, %v3163
    // Predicated region
    $region30: #{chess_resnet_forward.1} parent=1 // pred_check
      _
    $region31: #{chess_resnet_forward.1} parent=1 // pred_check_branch
      %3167 = sbr.rel (0) target = $region33
    $region32: #{chess_resnet_forward.1} parent=1 // pred_region
      // Predicated region
      $region34: #{chess_resnet_forward.1} parent=32 // pred_check
        _
      $region35: #{chess_resnet_forward.1} parent=32 // pred_check_branch
        %3169 = sbr.rel (0) target = $region37
      $region36: #{chess_resnet_forward.1} parent=32 // pred_region
        // Predicated region
        $region38: #{chess_resnet_forward.1} parent=36 // pred_check
          _
        $region39: #{chess_resnet_forward.1} parent=36 // pred_check_branch
          %3171 = sbr.rel target = $region41
        $region40: #{chess_resnet_forward.1} parent=36 // pred_region
          // Predicated region
          $region53: #{chess_resnet_forward.1} parent=40 // pred_check
            _
          $region54: #{chess_resnet_forward.1} parent=40 // pred_check_branch
            %3186 = sbr.rel (0) target = $region56
          $region55: #{chess_resnet_forward.1} parent=40 // pred_region
            loop: start=0, step=1, limit=1
            $region57: #{chess_resnet_forward.1} parent=55 // loop_pre_header
              _
            $region58: #{chess_resnet_forward.1} parent=55 // loop_header
              %s3189 = sphi 0, %s3193
              %p3190 = scmp.ge.s32.totalorder %s3189, 1
              %s3194 = sphi [#allocation3], [#allocation3]
              %s3195 = sphi %s7, %s7
            $region59: #{chess_resnet_forward.1} parent=55 // loop_header_branch
              %3192 = sbr.rel (%p3190) target = $region63
            $region60: #{chess_resnet_forward.1} parent=55 // loop_body
              %v3196 = vld [vmem:[%s3194] sm:$0x3]
              %3197 = vst [vmem:[%s3195] sm:$0x3] %v3196
            $region61: #{chess_resnet_forward.1} parent=55 // loop_footer
              %s3193 = sadd.s32 1, %s3189
            $region62: #{chess_resnet_forward.1} parent=55 // loop_footer_branch
              %3188 = sbr.rel target = $region58
            $region63: #{chess_resnet_forward.1} parent=55 // loop_exit
              _
          $region56: #{chess_resnet_forward.1} parent=40 // pred_fallthru
            _
        $region41: #{chess_resnet_forward.1} parent=36 // pred_fallthru
          _
        // Predicated region
        $region42: #{chess_resnet_forward.1} parent=36 // pred_check
          _
        $region43: #{chess_resnet_forward.1} parent=36 // pred_check_branch
          %3173 = sbr.rel (0) target = $region45
        $region44: #{chess_resnet_forward.1} parent=36 // pred_region
          loop: start=0, step=1, limit=1
          $region46: #{chess_resnet_forward.1} parent=44 // loop_pre_header
            _
          $region47: #{chess_resnet_forward.1} parent=44 // loop_header
            %s3176 = sphi 0, %s3180
            %p3177 = scmp.ge.s32.totalorder %s3176, 1
            %s3181 = sphi [#allocation3], [#allocation3]
            %s3182 = sphi %s7, %s7
          $region48: #{chess_resnet_forward.1} parent=44 // loop_header_branch
            %3179 = sbr.rel (%p3177) target = $region52
          $region49: #{chess_resnet_forward.1} parent=44 // loop_body
            %v3183 = vld [vmem:[%s3181] sm:$0x3]
            %3184 = vst [vmem:[%s3182] sm:$0x3] %v3183
          $region50: #{chess_resnet_forward.1} parent=44 // loop_footer
            %s3180 = sadd.s32 1, %s3176
          $region51: #{chess_resnet_forward.1} parent=44 // loop_footer_branch
            %3175 = sbr.rel target = $region47
          $region52: #{chess_resnet_forward.1} parent=44 // loop_exit
            _
        $region45: #{chess_resnet_forward.1} parent=36 // pred_fallthru
          _
      $region37: #{chess_resnet_forward.1} parent=32 // pred_fallthru
        _
      %3198 = vnop
    $region33: #{chess_resnet_forward.1} parent=1 // pred_fallthru
      _
    // Predicated region
    $region64: #{chess_resnet_forward.1} parent=1 // pred_check
      _
    $region65: #{chess_resnet_forward.1} parent=1 // pred_check_branch
      %3200 = sbr.rel (0) target = $region67
    $region66: #{chess_resnet_forward.1} parent=1 // pred_region
      _
    $region67: #{chess_resnet_forward.1} parent=1 // pred_fallthru
      _

</llo_original>
